<compile_context>
chip_gen: v5e
topology: v5e:2x2
jax: 0.10.0
libtpu: 0.0.40
codegen_flags: <defaults>
</compile_context>

<pallas_src>
import numpy as np
import jax
import jax.numpy as jnp
from jax.experimental import pallas as pl
from jax.experimental.pallas import tpu as pltpu

_PI = float(np.pi)

# is_yz_rot_sym_objs is hard-coded empty (zeros) in the reference module.
_USE_YZ_SYM_OBJS = False

# ------------------------- input-slab row layout [85, S*N] -------------------
_R_ROT_GT = 0       # 3  obj_rot_gt
_R_TRANS_GT = 3     # 3  obj_trans_gt
_R_HRT_GT = 6       # 3  hand_rel_trans_gt
_R_CAM_GT = 9       # 3  cam_param_gt (s, c1, c2)
_R_CORNER_GT = 12   # 16 obj_corner_gt[:, :, :2] flattened (corner-major)
_R_OID = 28         # 1  obj_id
_R_VALID = 29       # 1  obj_pose_valid
_R_BB = 30          # 24 obj_bb_rest, row = 30 + 8*coord + corner
_R_ROT_P = 54       # 3  obj_rot_pred
_R_TRANS_P = 57     # 3  obj_trans_pred
_R_TLEFT_P = 60     # 3  obj_trans_left_pred
_R_HRT_P = 63       # 3  hand_rel_trans_pred
_R_CAM_P = 66       # 3  cam_param_pred
_R_CORNER_P = 69    # 16 obj_corner_pred
_SLAB_ROWS = 85

# ------------------------- output-slab row layout [24, S*N] ------------------
_O_ROT = 0          # 3  loss_obj_rot
_O_TRANS = 3        # 3  loss_obj_trans
_O_CORNER_PRED = 6  # 16 loss_obj_corner_pred
_O_CORNERS = 22     # 1  loss_corners
_O_CORNERS_2D = 23  # 1  loss_corners_2d
_OUT_ROWS = 24


# ------------------------------------------------------------------------------
# Pallas kernel: whole forward pass in one grid-less invocation.
# ------------------------------------------------------------------------------
def _obj_pose_loss_kernel(slab_ref, out_ref):
    f32 = jnp.float32

    def row(i):
        return slab_ref[i:i + 1, :]            # [1, L] per-(stage,item) scalar

    def rows(i, k):
        return slab_ref[i:i + k, :]            # [k, L]

    def rodrigues(rx, ry, rz):
        # axis-angle -> rotation matrix (9 row-major components), eps = 1e-12.
        th = jnp.sqrt(rx * rx + ry * ry + rz * rz + 1e-12)
        inv_th = 1.0 / th                      # one exact reciprocal, not 3 divides
        kx, ky, kz = rx * inv_th, ry * inv_th, rz * inv_th
        c = jnp.cos(th)
        s = jnp.sin(th)
        t = 1.0 - c
        return (c + t * kx * kx, t * kx * ky - s * kz, t * kx * kz + s * ky,
                t * ky * kx + s * kz, c + t * ky * ky, t * ky * kz - s * kx,
                t * kz * kx - s * ky, t * kz * ky + s * kx, c + t * kz * kz)

    def matmul3(a, b):
        # per-lane 3x3 product C = A @ B on 9-component tuples (pure VPU).
        return tuple(a[3 * i + 0] * b[0 + j] + a[3 * i + 1] * b[3 + j]
                     + a[3 * i + 2] * b[6 + j]
                     for i in range(3) for j in range(3))

    def apply_rot(r, bx, by, bz, tx, ty, tz):
        # (bb @ R^T) + t per corner:  out_j = sum_c bb_c * R[j, c] + t_j
        return (bx * r[0] + by * r[1] + bz * r[2] + tx,
                bx * r[3] + by * r[4] + bz * r[5] + ty,
                bx * r[6] + by * r[7] + bz * r[8] + tz)

    # ---------------- GT side (already tiled over S along lanes) -------------
    Rg = rodrigues(row(_R_ROT_GT), row(_R_ROT_GT + 1), row(_R_ROT_GT + 2))
    tgx, tgy, tgz = row(_R_TRANS_GT), row(_R_TRANS_GT + 1), row(_R_TRANS_GT + 2)
    bx = rows(_R_BB + 0, 8)                    # [8, L] x-coord of the 8 corners
    by = rows(_R_BB + 8, 8)
    bz = rows(_R_BB + 16, 8)

    bgx, bgy, bgz = apply_rot(Rg, bx, by, bz, tgx, tgy, tgz)        # obj_bb_gt

    # pi flip around the GT frame's z axis (column 2 of R_gt = indices 2,5,8)
    R_fz = matmul3(rodrigues(Rg[2] * _PI, Rg[5] * _PI, Rg[8] * _PI), Rg)
    bzx, bzy, bzz = apply_rot(R_fz, bx, by, bz, tgx, tgy, tgz)

    oid = row(_R_OID)
    zsym = ((oid == 6.0) | (oid == 21.0) | (oid == 10.0)
            | (oid == 4.0) | (oid == 3.0)).astype(f32)
    bowl = ((oid == 24.0) | (oid == 10.0)).astype(f32)
    vb = row(_R_VALID) * (1.0 - bowl) + 4.0 * bowl                  # [1, L]

    bzx = bzx * zsym + bgx * (1.0 - zsym)
    bzy = bzy * zsym + bgy * (1.0 - zsym)
    bzz = bzz * zsym + bgz * (1.0 - zsym)

    sg, c1g, c2g = row(_R_CAM_GT), row(_R_CAM_GT + 1), row(_R_CAM_GT + 2)
    g2x, g2y = bgx * sg + c1g, bgy * sg + c2g
    z2x, z2y = bzx * sg + c1g, bzy * sg + c2g

    if _USE_YZ_SYM_OBJS:
        # Dead in the reference module (is_yz_rot_sym_objs == zeros); kept
        # behind the flag so enabling a yz-symmetric object set restores it.
        ysym = jnp.zeros_like(oid)
        R_fy = matmul3(rodrigues(Rg[1] * _PI, Rg[4] * _PI, Rg[7] * _PI), Rg)
        R_fyz = matmul3(rodrigues(R_fz[1] * _PI, R_fz[4] * _PI, R_fz[7] * _PI),
                        R_fz)
        byx, byy, byz = apply_rot(R_fy, bx, by, bz, tgx, tgy, tgz)
        byzx, byzy, byzz = apply_rot(R_fyz, bx, by, bz, tgx, tgy, tgz)
        byx = byx * ysym + bgx * (1.0 - ysym)
        byy = byy * ysym + bgy * (1.0 - ysym)
        byz = byz * ysym + bgz * (1.0 - ysym)
        byzx = byzx * ysym + bgx * (1.0 - ysym)
        byzy = byzy * ysym + bgy * (1.0 - ysym)
        byzz = byzz * ysym + bgz * (1.0 - ysym)
        y2x, y2y = byx * sg + c1g, byy * sg + c2g
        yz2x, yz2y = byzx * sg + c1g, byzy * sg + c2g

    # ---------------------------- prediction side -----------------------------
    Rp = rodrigues(row(_R_ROT_P), row(_R_ROT_P + 1), row(_R_ROT_P + 2))
    tpx, tpy, tpz = row(_R_TRANS_P), row(_R_TRANS_P + 1), row(_R_TRANS_P + 2)
    pbx, pby, pbz = apply_rot(Rp, bx, by, bz, tpx, tpy, tpz)        # [8, L]

    sp, c1p, c2p = row(_R_CAM_P), row(_R_CAM_P + 1), row(_R_CAM_P + 2)
    p2x, p2y = pbx * sp + c1p, pby * sp + c2p                       # [8, L]

    # 3D corner loss: mean over 3 coords & 8 corners, x1000, x valid (pre-min)
    def corner_loss_3d(ax, ay, az):
        d = jnp.abs(pbx - ax) + jnp.abs(pby - ay) + jnp.abs(pbz - az)  # [8, L]
        return jnp.sum(d, axis=0, keepdims=True) * (1000.0 / 24.0) * vb

    # 2D corner loss: mean over 2 coords & 8 corners; valid applied after min
    def corner_loss_2d(ax, ay):
        d = jnp.abs(p2x - ax) + jnp.abs(p2y - ay)
        return jnp.sum(d, axis=0, keepdims=True) * (1.0 / 16.0)

    loss_corners = jnp.minimum(corner_loss_3d(bzx, bzy, bzz),
                               corner_loss_3d(bgx, bgy, bgz))       # [1, L]
    loss_c2d = jnp.minimum(corner_loss_2d(g2x, g2y),
                           corner_loss_2d(z2x, z2y))                # [1, L]
    if _USE_YZ_SYM_OBJS:
        loss_corners = jnp.minimum(loss_corners, corner_loss_3d(byx, byy, byz))
        loss_corners = jnp.minimum(loss_corners,
                                   corner_loss_3d(byzx, byzy, byzz))
        loss_c2d = jnp.minimum(loss_c2d, corner_loss_2d(y2x, y2y))
        loss_c2d = jnp.minimum(loss_c2d, corner_loss_2d(yz2x, yz2y))
    loss_corners_2d = loss_c2d * vb

    # rotation / translation / 2D corner-prediction losses (elementwise)
    loss_rot = jnp.abs(rows(_R_ROT_P, 3) - rows(_R_ROT_GT, 3)) * vb   # [3, L]

    tg3 = rows(_R_TRANS_GT, 3)
    tp3 = rows(_R_TRANS_P, 3)
    tl3 = rows(_R_TLEFT_P, 3)
    loss_trans = (jnp.abs(tp3 - tg3)
                  + jnp.abs(tl3 - (tg3 - rows(_R_HRT_GT, 3)))
                  + jnp.abs(rows(_R_HRT_P, 3) + tl3 - tp3)) * vb      # [3, L]

    loss_cp = jnp.abs(rows(_R_CORNER_P, 16)
                      - rows(_R_CORNER_GT, 16)) * vb                  # [16, L]

    # -------- single packed store: rows [rot | trans | corner_pred | 3d | 2d]
    out_ref[...] = jnp.concatenate(
        [loss_rot, loss_trans, loss_cp, loss_corners, loss_corners_2d], axis=0)


# ------------------------------------------------------------------------------
# Wrapper: builds the lane-packed slab, calls the kernel, unpacks (all jitted).
# ------------------------------------------------------------------------------
@jax.jit
def obj_pose_loss_pallas(obj_rot_pred, obj_trans_pred, obj_trans_left_pred,
                         hand_rel_trans_pred, obj_rot_gt, obj_trans_gt,
                         hand_rel_trans_gt, obj_bb_rest, obj_pose_valid,
                         obj_corner_pred, obj_corner_gt, obj_id,
                         hand_rel_trans_valid, cam_param_pred, cam_param_gt):
    del hand_rel_trans_valid        # intentionally unused (matches torch forward)
    f32 = jnp.float32
    S, N = obj_rot_pred.shape[0], obj_rot_pred.shape[1]
    L = S * N

    # GT-side columns [N, 30] -> tile x S over rows -> transpose -> [30, L]
    gt_cols = jnp.concatenate([
        obj_rot_gt.astype(f32),                                   # 3
        obj_trans_gt.astype(f32),                                 # 3
        hand_rel_trans_gt.astype(f32),                            # 3
        cam_param_gt.astype(f32),                                 # 3
        obj_corner_gt.astype(f32)[:, :, :2].reshape(N, 16),       # 16
        obj_id.astype(f32).reshape(N, 1),                         # 1
        obj_pose_valid.astype(f32).reshape(N, 1),                 # 1
    ], axis=1)
    gt_rows = jnp.tile(gt_cols, (S, 1)).T                         # [30, L]

    # bb: [N,8,3] -> [3,8,N] -> [24, N] -> tile lanes x S -> [24, L]
    bb_rows = jnp.tile(
        jnp.transpose(obj_bb_rest.astype(f32), (2, 1, 0)).reshape(24, N),
        (1, S))

    # pred-side columns [S, N, 31] -> [L, 31] -> [31, L]
    pred_rows = jnp.concatenate([
        obj_rot_pred.astype(f32), obj_trans_pred.astype(f32),
        obj_trans_left_pred.astype(f32), hand_rel_trans_pred.astype(f32),
        cam_param_pred.astype(f32), obj_corner_pred.astype(f32),
    ], axis=2).reshape(L, 31).T

    slab = jnp.concatenate([gt_rows, bb_rows, pred_rows], axis=0)  # [85, L]

    vmem = pl.BlockSpec(memory_space=pltpu.MemorySpace.VMEM)
    packed = pl.pallas_call(
        _obj_pose_loss_kernel,
        out_shape=jax.ShapeDtypeStruct((_OUT_ROWS, L), f32),
        in_specs=[vmem],
        out_specs=vmem,
        cost_estimate=pl.CostEstimate(
            flops=900 * L, transcendentals=12 * L,
            bytes_accessed=(_SLAB_ROWS + _OUT_ROWS) * L * 4),
    )(slab)

    def unrows(r0, k):
        return packed[r0:r0 + k, :].T.reshape(S, N, k)

    loss_obj_rot = unrows(_O_ROT, 3)
    loss_obj_trans = unrows(_O_TRANS, 3)
    loss_obj_corner_pred = unrows(_O_CORNER_PRED, 16).reshape(S, N, 8, 2)
    loss_corners = packed[_O_CORNERS, :].reshape(S, N)
    loss_corners_2d = packed[_O_CORNERS_2D, :].reshape(S, N)
    return (loss_corners, loss_obj_rot, loss_obj_trans,
            loss_obj_corner_pred, loss_corners_2d)


# ------------------------------------------------------------------------------
# Pure-JAX reference (line-by-line mirror of the torch forward).
# ------------------------------------------------------------------------------
def _rodrigues_ref(rvec):
    th = jnp.sqrt(jnp.sum(rvec * rvec, axis=-1, keepdims=True) + 1e-12)
    k = rvec / th
    kx, ky, kz = k[:, 0], k[:, 1], k[:, 2]
    c = jnp.cos(th[:, 0])
    s = jnp.sin(th[:, 0])
    t = 1.0 - c
    rows = [c + t * kx * kx, t * kx * ky - s * kz, t * kx * kz + s * ky,
            t * ky * kx + s * kz, c + t * ky * ky, t * ky * kz - s * kx,
            t * kz * kx - s * ky, t * kz * ky + s * kx, c + t * kz * kz]
    return jnp.stack(rows, axis=-1).reshape(-1, 3, 3)


def reference_forward(obj_rot_pred, obj_trans_pred, obj_trans_left_pred,
                      hand_rel_trans_pred, obj_rot_gt, obj_trans_gt,
                      hand_rel_trans_gt, obj_bb_rest, obj_pose_valid,
                      obj_corner_pred, obj_corner_gt, obj_id,
                      hand_rel_trans_valid, cam_param_pred, cam_param_gt):
    f32 = jnp.float32
    hp = jax.lax.Precision.HIGHEST
    S, N = obj_rot_pred.shape[0], obj_rot_pred.shape[1]

    R_gt = _rodrigues_ref(obj_rot_gt)
    bb_gt = jnp.matmul(obj_bb_rest, jnp.swapaxes(R_gt, 1, 2), precision=hp) \
        + obj_trans_gt[:, None]
    R_fz = jnp.matmul(_rodrigues_ref(R_gt[:, :3, 2] * _PI), R_gt, precision=hp)
    bb_fz = jnp.matmul(obj_bb_rest, jnp.swapaxes(R_fz, 1, 2), precision=hp) \
        + obj_trans_gt[:, None]
    R_fy = jnp.matmul(_rodrigues_ref(R_gt[:, :3, 1] * _PI), R_gt, precision=hp)
    bb_fy = jnp.matmul(obj_bb_rest, jnp.swapaxes(R_fy, 1, 2), precision=hp) \
        + obj_trans_gt[:, None]
    R_fyz = jnp.matmul(_rodrigues_ref(R_fz[:, :3, 1] * _PI), R_fz, precision=hp)
    bb_fyz = jnp.matmul(obj_bb_rest, jnp.swapaxes(R_fyz, 1, 2), precision=hp) \
        + obj_trans_gt[:, None]

    is_z = ((obj_id == 6) | (obj_id == 21) | (obj_id == 10)
            | (obj_id == 4) | (obj_id == 3)).astype(f32)[:, None, None]
    bb_fz = bb_fz * is_z + bb_gt * (1.0 - is_z)
    is_yz = (jnp.zeros_like(obj_id) * 1.0).astype(f32)[:, None, None]
    bb_fy = bb_fy * is_yz + bb_gt * (1.0 - is_yz)
    bb_fyz = bb_fyz * is_yz + bb_gt * (1.0 - is_yz)

    def proj_gt(bb):
        return bb[:, :, :2] * cam_param_gt[:, None, :1] + cam_param_gt[:, None, 1:]
    bb2_gt, bb2_fz = proj_gt(bb_gt), proj_gt(bb_fz)
    bb2_fy, bb2_fyz = proj_gt(bb_fy), proj_gt(bb_fyz)

    is_bowl = ((obj_id == 24) | (obj_id == 10)).astype(f32)
    valid_bowl = obj_pose_valid * (1.0 - is_bowl) + 4.0 * is_bowl

    corner_pred1 = obj_corner_pred.reshape(S, N, 8, 2)
    loss_obj_corner_pred = jnp.abs(corner_pred1 - obj_corner_gt[:, :, :2][None]) \
        * valid_bowl[None, :, None, None]

    bb_rest1 = jnp.broadcast_to(obj_bb_rest[None], (S, N, 8, 3)).reshape(-1, 8, 3)
    R_pred = _rodrigues_ref(obj_rot_pred.reshape(-1, 3))
    bb_pred = jnp.matmul(bb_rest1, jnp.swapaxes(R_pred, 1, 2), precision=hp) \
        + obj_trans_pred.reshape(-1, 3)[:, None]
    loss_obj_rot = jnp.abs(obj_rot_pred - obj_rot_gt[None]) * valid_bowl[None, :, None]

    bb2_pred = bb_pred[:, :, :2].reshape(S, N, 8, 2) * cam_param_pred[:, :, None, :1] \
        + cam_param_pred[:, :, None, 1:]

    def m2(x):
        return jnp.mean(jnp.mean(x, axis=3), axis=2)

    l2_un = m2(jnp.abs(bb2_pred - bb2_gt[None]))
    l2_fz = m2(jnp.abs(bb2_pred - bb2_fz[None]))
    l2_fy = m2(jnp.abs(bb2_pred - bb2_fy[None]))
    l2_fyz = m2(jnp.abs(bb2_pred - bb2_fyz[None]))
    loss_corners_2d = jnp.minimum(
        jnp.minimum(jnp.minimum(l2_un, l2_fz), l2_fy), l2_fyz) * valid_bowl[None]

    valid1 = valid_bowl[None, :, None, None]
    bb_pred1 = bb_pred.reshape(S, N, 8, 3)
    lc_un = m2(jnp.abs(bb_pred1 - bb_gt[None]) * 1000.0 * valid1)
    lc_fz = m2(jnp.abs(bb_pred1 - bb_fz[None]) * 1000.0 * valid1)
    lc_fy = m2(jnp.abs(bb_pred1 - bb_fy[None]) * 1000.0 * valid1)
    lc_fyz = m2(jnp.abs(bb_pred1 - bb_fyz[None]) * 1000.0 * valid1)
    loss_corners = jnp.minimum(jnp.minimum(jnp.minimum(lc_fz, lc_un), lc_fy), lc_fyz)

    loss_obj_trans = jnp.abs(obj_trans_pred - obj_trans_gt[None]) * valid_bowl[None, :, None]
    obj_trans_left_gt = obj_trans_gt - hand_rel_trans_gt
    loss_left = jnp.abs(obj_trans_left_pred - obj_trans_left_gt[None]) \
        * valid_bowl[None, :, None]
    loss_tri = jnp.abs(hand_rel_trans_pred + obj_trans_left_pred - obj_trans_pred) \
        * valid_bowl[None, :, None]
    loss_obj_trans = loss_obj_trans + loss_left + loss_tri

    return (loss_corners, loss_obj_rot, loss_obj_trans,
            loss_obj_corner_pred, loss_corners_2d)


if __name__ == "__main__":
    key = jax.random.PRNGKey(0)
    ks = jax.random.split(key, 14)
    S, N = 6, 8
    f32 = jnp.float32

    obj_rot_pred = jax.random.normal(ks[0], (S, N, 3), f32)
    obj_trans_pred = jax.random.normal(ks[1], (S, N, 3), f32) * 0.3
    obj_trans_left_pred = jax.random.normal(ks[2], (S, N, 3), f32) * 0.3
    hand_rel_trans_pred = jax.random.normal(ks[3], (S, N, 3), f32) * 0.1
    obj_rot_gt = jax.random.normal(ks[4], (N, 3), f32)
    obj_trans_gt = jax.random.normal(ks[5], (N, 3), f32) * 0.3
    hand_rel_trans_gt = jax.random.normal(ks[6], (N, 3), f32) * 0.1
    obj_bb_rest = jax.random.uniform(ks[7], (N, 8, 3), f32, -0.08, 0.08)
    obj_pose_valid = (jax.random.uniform(ks[8], (N,)) > 0.25).astype(f32)
    obj_corner_pred = jax.random.normal(ks[9], (S, N, 16), f32) * 50.0 + 100.0
    obj_corner_gt = jax.random.normal(ks[10], (N, 8, 3), f32) * 50.0 + 100.0
    obj_id = jax.random.randint(ks[11], (N,), 0, 30)
    hand_rel_trans_valid = jnp.ones((N,), f32)
    cam_param_pred = (jax.random.normal(ks[12], (S, N, 3), f32)
                      * jnp.array([0.3, 30.0, 30.0], f32)
                      + jnp.array([1.2, 120.0, 120.0], f32))
    cam_param_gt = (jax.random.normal(ks[13], (N, 3), f32)
                    * jnp.array([0.3, 30.0, 30.0], f32)
                    + jnp.array([1.2, 120.0, 120.0], f32))

    args = (obj_rot_pred, obj_trans_pred, obj_trans_left_pred,
            hand_rel_trans_pred, obj_rot_gt, obj_trans_gt, hand_rel_trans_gt,
            obj_bb_rest, obj_pose_valid, obj_corner_pred, obj_corner_gt,
            obj_id, hand_rel_trans_valid, cam_param_pred, cam_param_gt)

    outs = obj_pose_loss_pallas(*args)
    outs = jax.block_until_ready(outs)

    refs = reference_forward(*args)
    for got, want in zip(outs, refs):
        np.testing.assert_allclose(np.asarray(got), np.asarray(want),
                                   rtol=2e-3, atol=1e-2)
    print("KERNEL_OK")
</pallas_src>

<mosaic_0001>
module attributes {stable_mosaic.version = 11 : i64} {
  func.func @_obj_pose_loss_kernel(%arg0: memref<85x48xf32, #tpu.memory_space<vmem>>, %arg1: memref<24x48xf32, #tpu.memory_space<vmem>>) attributes {dimension_semantics = [], scalar_prefetch = 0 : i64, scratch_operands = 0 : i64, tpu.core_type = #tpu.core_type<tc>} {
    %c0 = arith.constant 0 : index
    %c0_0 = arith.constant 0 : index
    %0 = vector.load %arg0[%c0, %c0_0] : memref<85x48xf32, #tpu.memory_space<vmem>>, vector<1x48xf32>
    %c1 = arith.constant 1 : index
    %c0_1 = arith.constant 0 : index
    %1 = vector.load %arg0[%c1, %c0_1] : memref<85x48xf32, #tpu.memory_space<vmem>>, vector<1x48xf32>
    %c2 = arith.constant 2 : index
    %c0_2 = arith.constant 0 : index
    %2 = vector.load %arg0[%c2, %c0_2] : memref<85x48xf32, #tpu.memory_space<vmem>>, vector<1x48xf32>
    %3 = arith.mulf %0, %0 : vector<1x48xf32>
    %4 = arith.mulf %1, %1 : vector<1x48xf32>
    %5 = arith.addf %3, %4 : vector<1x48xf32>
    %6 = arith.mulf %2, %2 : vector<1x48xf32>
    %7 = arith.addf %5, %6 : vector<1x48xf32>
    %cst = arith.constant 9.99999996E-13 : f32
    %8 = vector.broadcast %cst : f32 to vector<1x48xf32>
    %9 = arith.addf %7, %8 : vector<1x48xf32>
    %10 = math.sqrt %9 : vector<1x48xf32>
    %cst_3 = arith.constant 1.000000e+00 : f32
    %11 = vector.broadcast %cst_3 : f32 to vector<1x48xf32>
    %12 = arith.divf %11, %10 : vector<1x48xf32>
    %13 = arith.mulf %0, %12 : vector<1x48xf32>
    %14 = arith.mulf %1, %12 : vector<1x48xf32>
    %15 = arith.mulf %2, %12 : vector<1x48xf32>
    %16 = math.cos %10 : vector<1x48xf32>
    %17 = math.sin %10 : vector<1x48xf32>
    %cst_4 = arith.constant 1.000000e+00 : f32
    %18 = vector.broadcast %cst_4 : f32 to vector<1x48xf32>
    %19 = arith.subf %18, %16 : vector<1x48xf32>
    %20 = arith.mulf %19, %13 : vector<1x48xf32>
    %21 = arith.mulf %20, %13 : vector<1x48xf32>
    %22 = arith.addf %16, %21 : vector<1x48xf32>
    %23 = arith.mulf %19, %13 : vector<1x48xf32>
    %24 = arith.mulf %23, %14 : vector<1x48xf32>
    %25 = arith.mulf %17, %15 : vector<1x48xf32>
    %26 = arith.subf %24, %25 : vector<1x48xf32>
    %27 = arith.mulf %19, %13 : vector<1x48xf32>
    %28 = arith.mulf %27, %15 : vector<1x48xf32>
    %29 = arith.mulf %17, %14 : vector<1x48xf32>
    %30 = arith.addf %28, %29 : vector<1x48xf32>
    %31 = arith.mulf %19, %14 : vector<1x48xf32>
    %32 = arith.mulf %31, %13 : vector<1x48xf32>
    %33 = arith.mulf %17, %15 : vector<1x48xf32>
    %34 = arith.addf %32, %33 : vector<1x48xf32>
    %35 = arith.mulf %19, %14 : vector<1x48xf32>
    %36 = arith.mulf %35, %14 : vector<1x48xf32>
    %37 = arith.addf %16, %36 : vector<1x48xf32>
    %38 = arith.mulf %19, %14 : vector<1x48xf32>
    %39 = arith.mulf %38, %15 : vector<1x48xf32>
    %40 = arith.mulf %17, %13 : vector<1x48xf32>
    %41 = arith.subf %39, %40 : vector<1x48xf32>
    %42 = arith.mulf %19, %15 : vector<1x48xf32>
    %43 = arith.mulf %42, %13 : vector<1x48xf32>
    %44 = arith.mulf %17, %14 : vector<1x48xf32>
    %45 = arith.subf %43, %44 : vector<1x48xf32>
    %46 = arith.mulf %19, %15 : vector<1x48xf32>
    %47 = arith.mulf %46, %14 : vector<1x48xf32>
    %48 = arith.mulf %17, %13 : vector<1x48xf32>
    %49 = arith.addf %47, %48 : vector<1x48xf32>
    %50 = arith.mulf %19, %15 : vector<1x48xf32>
    %51 = arith.mulf %50, %15 : vector<1x48xf32>
    %52 = arith.addf %16, %51 : vector<1x48xf32>
    %c3 = arith.constant 3 : index
    %c0_5 = arith.constant 0 : index
    %53 = vector.load %arg0[%c3, %c0_5] : memref<85x48xf32, #tpu.memory_space<vmem>>, vector<1x48xf32>
    %c4 = arith.constant 4 : index
    %c0_6 = arith.constant 0 : index
    %54 = vector.load %arg0[%c4, %c0_6] : memref<85x48xf32, #tpu.memory_space<vmem>>, vector<1x48xf32>
    %c5 = arith.constant 5 : index
    %c0_7 = arith.constant 0 : index
    %55 = vector.load %arg0[%c5, %c0_7] : memref<85x48xf32, #tpu.memory_space<vmem>>, vector<1x48xf32>
    %c30 = arith.constant 30 : index
    %c0_8 = arith.constant 0 : index
    %56 = vector.load %arg0[%c30, %c0_8] : memref<85x48xf32, #tpu.memory_space<vmem>>, vector<8x48xf32>
    %c38 = arith.constant 38 : index
    %c0_9 = arith.constant 0 : index
    %57 = vector.load %arg0[%c38, %c0_9] : memref<85x48xf32, #tpu.memory_space<vmem>>, vector<8x48xf32>
    %c46 = arith.constant 46 : index
    %c0_10 = arith.constant 0 : index
    %58 = vector.load %arg0[%c46, %c0_10] : memref<85x48xf32, #tpu.memory_space<vmem>>, vector<8x48xf32>
    %59 = vector.broadcast %22 : vector<1x48xf32> to vector<8x48xf32>
    %60 = arith.mulf %56, %59 : vector<8x48xf32>
    %61 = vector.broadcast %26 : vector<1x48xf32> to vector<8x48xf32>
    %62 = arith.mulf %57, %61 : vector<8x48xf32>
    %63 = arith.addf %60, %62 : vector<8x48xf32>
    %64 = vector.broadcast %30 : vector<1x48xf32> to vector<8x48xf32>
    %65 = arith.mulf %58, %64 : vector<8x48xf32>
    %66 = arith.addf %63, %65 : vector<8x48xf32>
    %67 = vector.broadcast %53 : vector<1x48xf32> to vector<8x48xf32>
    %68 = arith.addf %66, %67 : vector<8x48xf32>
    %69 = vector.broadcast %34 : vector<1x48xf32> to vector<8x48xf32>
    %70 = arith.mulf %56, %69 : vector<8x48xf32>
    %71 = vector.broadcast %37 : vector<1x48xf32> to vector<8x48xf32>
    %72 = arith.mulf %57, %71 : vector<8x48xf32>
    %73 = arith.addf %70, %72 : vector<8x48xf32>
    %74 = vector.broadcast %41 : vector<1x48xf32> to vector<8x48xf32>
    %75 = arith.mulf %58, %74 : vector<8x48xf32>
    %76 = arith.addf %73, %75 : vector<8x48xf32>
    %77 = vector.broadcast %54 : vector<1x48xf32> to vector<8x48xf32>
    %78 = arith.addf %76, %77 : vector<8x48xf32>
    %79 = vector.broadcast %45 : vector<1x48xf32> to vector<8x48xf32>
    %80 = arith.mulf %56, %79 : vector<8x48xf32>
    %81 = vector.broadcast %49 : vector<1x48xf32> to vector<8x48xf32>
    %82 = arith.mulf %57, %81 : vector<8x48xf32>
    %83 = arith.addf %80, %82 : vector<8x48xf32>
    %84 = vector.broadcast %52 : vector<1x48xf32> to vector<8x48xf32>
    %85 = arith.mulf %58, %84 : vector<8x48xf32>
    %86 = arith.addf %83, %85 : vector<8x48xf32>
    %87 = vector.broadcast %55 : vector<1x48xf32> to vector<8x48xf32>
    %88 = arith.addf %86, %87 : vector<8x48xf32>
    %cst_11 = arith.constant 3.14159274 : f32
    %89 = vector.broadcast %cst_11 : f32 to vector<1x48xf32>
    %90 = arith.mulf %30, %89 : vector<1x48xf32>
    %cst_12 = arith.constant 3.14159274 : f32
    %91 = vector.broadcast %cst_12 : f32 to vector<1x48xf32>
    %92 = arith.mulf %41, %91 : vector<1x48xf32>
    %cst_13 = arith.constant 3.14159274 : f32
    %93 = vector.broadcast %cst_13 : f32 to vector<1x48xf32>
    %94 = arith.mulf %52, %93 : vector<1x48xf32>
    %95 = arith.mulf %90, %90 : vector<1x48xf32>
    %96 = arith.mulf %92, %92 : vector<1x48xf32>
    %97 = arith.addf %95, %96 : vector<1x48xf32>
    %98 = arith.mulf %94, %94 : vector<1x48xf32>
    %99 = arith.addf %97, %98 : vector<1x48xf32>
    %cst_14 = arith.constant 9.99999996E-13 : f32
    %100 = vector.broadcast %cst_14 : f32 to vector<1x48xf32>
    %101 = arith.addf %99, %100 : vector<1x48xf32>
    %102 = math.sqrt %101 : vector<1x48xf32>
    %cst_15 = arith.constant 1.000000e+00 : f32
    %103 = vector.broadcast %cst_15 : f32 to vector<1x48xf32>
    %104 = arith.divf %103, %102 : vector<1x48xf32>
    %105 = arith.mulf %90, %104 : vector<1x48xf32>
    %106 = arith.mulf %92, %104 : vector<1x48xf32>
    %107 = arith.mulf %94, %104 : vector<1x48xf32>
    %108 = math.cos %102 : vector<1x48xf32>
    %109 = math.sin %102 : vector<1x48xf32>
    %cst_16 = arith.constant 1.000000e+00 : f32
    %110 = vector.broadcast %cst_16 : f32 to vector<1x48xf32>
    %111 = arith.subf %110, %108 : vector<1x48xf32>
    %112 = arith.mulf %111, %105 : vector<1x48xf32>
    %113 = arith.mulf %112, %105 : vector<1x48xf32>
    %114 = arith.addf %108, %113 : vector<1x48xf32>
    %115 = arith.mulf %111, %105 : vector<1x48xf32>
    %116 = arith.mulf %115, %106 : vector<1x48xf32>
    %117 = arith.mulf %109, %107 : vector<1x48xf32>
    %118 = arith.subf %116, %117 : vector<1x48xf32>
    %119 = arith.mulf %111, %105 : vector<1x48xf32>
    %120 = arith.mulf %119, %107 : vector<1x48xf32>
    %121 = arith.mulf %109, %106 : vector<1x48xf32>
    %122 = arith.addf %120, %121 : vector<1x48xf32>
    %123 = arith.mulf %111, %106 : vector<1x48xf32>
    %124 = arith.mulf %123, %105 : vector<1x48xf32>
    %125 = arith.mulf %109, %107 : vector<1x48xf32>
    %126 = arith.addf %124, %125 : vector<1x48xf32>
    %127 = arith.mulf %111, %106 : vector<1x48xf32>
    %128 = arith.mulf %127, %106 : vector<1x48xf32>
    %129 = arith.addf %108, %128 : vector<1x48xf32>
    %130 = arith.mulf %111, %106 : vector<1x48xf32>
    %131 = arith.mulf %130, %107 : vector<1x48xf32>
    %132 = arith.mulf %109, %105 : vector<1x48xf32>
    %133 = arith.subf %131, %132 : vector<1x48xf32>
    %134 = arith.mulf %111, %107 : vector<1x48xf32>
    %135 = arith.mulf %134, %105 : vector<1x48xf32>
    %136 = arith.mulf %109, %106 : vector<1x48xf32>
    %137 = arith.subf %135, %136 : vector<1x48xf32>
    %138 = arith.mulf %111, %107 : vector<1x48xf32>
    %139 = arith.mulf %138, %106 : vector<1x48xf32>
    %140 = arith.mulf %109, %105 : vector<1x48xf32>
    %141 = arith.addf %139, %140 : vector<1x48xf32>
    %142 = arith.mulf %111, %107 : vector<1x48xf32>
    %143 = arith.mulf %142, %107 : vector<1x48xf32>
    %144 = arith.addf %108, %143 : vector<1x48xf32>
    %145 = arith.mulf %114, %22 : vector<1x48xf32>
    %146 = arith.mulf %118, %34 : vector<1x48xf32>
    %147 = arith.addf %145, %146 : vector<1x48xf32>
    %148 = arith.mulf %122, %45 : vector<1x48xf32>
    %149 = arith.addf %147, %148 : vector<1x48xf32>
    %150 = arith.mulf %114, %26 : vector<1x48xf32>
    %151 = arith.mulf %118, %37 : vector<1x48xf32>
    %152 = arith.addf %150, %151 : vector<1x48xf32>
    %153 = arith.mulf %122, %49 : vector<1x48xf32>
    %154 = arith.addf %152, %153 : vector<1x48xf32>
    %155 = arith.mulf %114, %30 : vector<1x48xf32>
    %156 = arith.mulf %118, %41 : vector<1x48xf32>
    %157 = arith.addf %155, %156 : vector<1x48xf32>
    %158 = arith.mulf %122, %52 : vector<1x48xf32>
    %159 = arith.addf %157, %158 : vector<1x48xf32>
    %160 = arith.mulf %126, %22 : vector<1x48xf32>
    %161 = arith.mulf %129, %34 : vector<1x48xf32>
    %162 = arith.addf %160, %161 : vector<1x48xf32>
    %163 = arith.mulf %133, %45 : vector<1x48xf32>
    %164 = arith.addf %162, %163 : vector<1x48xf32>
    %165 = arith.mulf %126, %26 : vector<1x48xf32>
    %166 = arith.mulf %129, %37 : vector<1x48xf32>
    %167 = arith.addf %165, %166 : vector<1x48xf32>
    %168 = arith.mulf %133, %49 : vector<1x48xf32>
    %169 = arith.addf %167, %168 : vector<1x48xf32>
    %170 = arith.mulf %126, %30 : vector<1x48xf32>
    %171 = arith.mulf %129, %41 : vector<1x48xf32>
    %172 = arith.addf %170, %171 : vector<1x48xf32>
    %173 = arith.mulf %133, %52 : vector<1x48xf32>
    %174 = arith.addf %172, %173 : vector<1x48xf32>
    %175 = arith.mulf %137, %22 : vector<1x48xf32>
    %176 = arith.mulf %141, %34 : vector<1x48xf32>
    %177 = arith.addf %175, %176 : vector<1x48xf32>
    %178 = arith.mulf %144, %45 : vector<1x48xf32>
    %179 = arith.addf %177, %178 : vector<1x48xf32>
    %180 = arith.mulf %137, %26 : vector<1x48xf32>
    %181 = arith.mulf %141, %37 : vector<1x48xf32>
    %182 = arith.addf %180, %181 : vector<1x48xf32>
    %183 = arith.mulf %144, %49 : vector<1x48xf32>
    %184 = arith.addf %182, %183 : vector<1x48xf32>
    %185 = arith.mulf %137, %30 : vector<1x48xf32>
    %186 = arith.mulf %141, %41 : vector<1x48xf32>
    %187 = arith.addf %185, %186 : vector<1x48xf32>
    %188 = arith.mulf %144, %52 : vector<1x48xf32>
    %189 = arith.addf %187, %188 : vector<1x48xf32>
    %190 = vector.broadcast %149 : vector<1x48xf32> to vector<8x48xf32>
    %191 = arith.mulf %56, %190 : vector<8x48xf32>
    %192 = vector.broadcast %154 : vector<1x48xf32> to vector<8x48xf32>
    %193 = arith.mulf %57, %192 : vector<8x48xf32>
    %194 = arith.addf %191, %193 : vector<8x48xf32>
    %195 = vector.broadcast %159 : vector<1x48xf32> to vector<8x48xf32>
    %196 = arith.mulf %58, %195 : vector<8x48xf32>
    %197 = arith.addf %194, %196 : vector<8x48xf32>
    %198 = vector.broadcast %53 : vector<1x48xf32> to vector<8x48xf32>
    %199 = arith.addf %197, %198 : vector<8x48xf32>
    %200 = vector.broadcast %164 : vector<1x48xf32> to vector<8x48xf32>
    %201 = arith.mulf %56, %200 : vector<8x48xf32>
    %202 = vector.broadcast %169 : vector<1x48xf32> to vector<8x48xf32>
    %203 = arith.mulf %57, %202 : vector<8x48xf32>
    %204 = arith.addf %201, %203 : vector<8x48xf32>
    %205 = vector.broadcast %174 : vector<1x48xf32> to vector<8x48xf32>
    %206 = arith.mulf %58, %205 : vector<8x48xf32>
    %207 = arith.addf %204, %206 : vector<8x48xf32>
    %208 = vector.broadcast %54 : vector<1x48xf32> to vector<8x48xf32>
    %209 = arith.addf %207, %208 : vector<8x48xf32>
    %210 = vector.broadcast %179 : vector<1x48xf32> to vector<8x48xf32>
    %211 = arith.mulf %56, %210 : vector<8x48xf32>
    %212 = vector.broadcast %184 : vector<1x48xf32> to vector<8x48xf32>
    %213 = arith.mulf %57, %212 : vector<8x48xf32>
    %214 = arith.addf %211, %213 : vector<8x48xf32>
    %215 = vector.broadcast %189 : vector<1x48xf32> to vector<8x48xf32>
    %216 = arith.mulf %58, %215 : vector<8x48xf32>
    %217 = arith.addf %214, %216 : vector<8x48xf32>
    %218 = vector.broadcast %55 : vector<1x48xf32> to vector<8x48xf32>
    %219 = arith.addf %217, %218 : vector<8x48xf32>
    %c28 = arith.constant 28 : index
    %c0_17 = arith.constant 0 : index
    %220 = vector.load %arg0[%c28, %c0_17] : memref<85x48xf32, #tpu.memory_space<vmem>>, vector<1x48xf32>
    %cst_18 = arith.constant 6.000000e+00 : f32
    %221 = vector.broadcast %cst_18 : f32 to vector<1x48xf32>
    %222 = arith.cmpf oeq, %220, %221 : vector<1x48xf32>
    %cst_19 = arith.constant 2.100000e+01 : f32
    %223 = vector.broadcast %cst_19 : f32 to vector<1x48xf32>
    %224 = arith.cmpf oeq, %220, %223 : vector<1x48xf32>
    %225 = arith.ori %222, %224 : vector<1x48xi1>
    %cst_20 = arith.constant 1.000000e+01 : f32
    %226 = vector.broadcast %cst_20 : f32 to vector<1x48xf32>
    %227 = arith.cmpf oeq, %220, %226 : vector<1x48xf32>
    %228 = arith.ori %225, %227 : vector<1x48xi1>
    %cst_21 = arith.constant 4.000000e+00 : f32
    %229 = vector.broadcast %cst_21 : f32 to vector<1x48xf32>
    %230 = arith.cmpf oeq, %220, %229 : vector<1x48xf32>
    %231 = arith.ori %228, %230 : vector<1x48xi1>
    %cst_22 = arith.constant 3.000000e+00 : f32
    %232 = vector.broadcast %cst_22 : f32 to vector<1x48xf32>
    %233 = arith.cmpf oeq, %220, %232 : vector<1x48xf32>
    %234 = arith.ori %231, %233 : vector<1x48xi1>
    %235 = arith.extui %234 : vector<1x48xi1> to vector<1x48xi32>
    %236 = arith.sitofp %235 : vector<1x48xi32> to vector<1x48xf32>
    %cst_23 = arith.constant 2.400000e+01 : f32
    %237 = vector.broadcast %cst_23 : f32 to vector<1x48xf32>
    %238 = arith.cmpf oeq, %220, %237 : vector<1x48xf32>
    %cst_24 = arith.constant 1.000000e+01 : f32
    %239 = vector.broadcast %cst_24 : f32 to vector<1x48xf32>
    %240 = arith.cmpf oeq, %220, %239 : vector<1x48xf32>
    %241 = arith.ori %238, %240 : vector<1x48xi1>
    %242 = arith.extui %241 : vector<1x48xi1> to vector<1x48xi32>
    %243 = arith.sitofp %242 : vector<1x48xi32> to vector<1x48xf32>
    %c29 = arith.constant 29 : index
    %c0_25 = arith.constant 0 : index
    %244 = vector.load %arg0[%c29, %c0_25] : memref<85x48xf32, #tpu.memory_space<vmem>>, vector<1x48xf32>
    %cst_26 = arith.constant 1.000000e+00 : f32
    %245 = vector.broadcast %cst_26 : f32 to vector<1x48xf32>
    %246 = arith.subf %245, %243 : vector<1x48xf32>
    %247 = arith.mulf %244, %246 : vector<1x48xf32>
    %cst_27 = arith.constant 4.000000e+00 : f32
    %248 = vector.broadcast %cst_27 : f32 to vector<1x48xf32>
    %249 = arith.mulf %248, %243 : vector<1x48xf32>
    %250 = arith.addf %247, %249 : vector<1x48xf32>
    %251 = vector.broadcast %236 : vector<1x48xf32> to vector<8x48xf32>
    %252 = arith.mulf %199, %251 : vector<8x48xf32>
    %cst_28 = arith.constant 1.000000e+00 : f32
    %253 = vector.broadcast %cst_28 : f32 to vector<1x48xf32>
    %254 = arith.subf %253, %236 : vector<1x48xf32>
    %255 = vector.broadcast %254 : vector<1x48xf32> to vector<8x48xf32>
    %256 = arith.mulf %68, %255 : vector<8x48xf32>
    %257 = arith.addf %252, %256 : vector<8x48xf32>
    %258 = vector.broadcast %236 : vector<1x48xf32> to vector<8x48xf32>
    %259 = arith.mulf %209, %258 : vector<8x48xf32>
    %cst_29 = arith.constant 1.000000e+00 : f32
    %260 = vector.broadcast %cst_29 : f32 to vector<1x48xf32>
    %261 = arith.subf %260, %236 : vector<1x48xf32>
    %262 = vector.broadcast %261 : vector<1x48xf32> to vector<8x48xf32>
    %263 = arith.mulf %78, %262 : vector<8x48xf32>
    %264 = arith.addf %259, %263 : vector<8x48xf32>
    %265 = vector.broadcast %236 : vector<1x48xf32> to vector<8x48xf32>
    %266 = arith.mulf %219, %265 : vector<8x48xf32>
    %cst_30 = arith.constant 1.000000e+00 : f32
    %267 = vector.broadcast %cst_30 : f32 to vector<1x48xf32>
    %268 = arith.subf %267, %236 : vector<1x48xf32>
    %269 = vector.broadcast %268 : vector<1x48xf32> to vector<8x48xf32>
    %270 = arith.mulf %88, %269 : vector<8x48xf32>
    %271 = arith.addf %266, %270 : vector<8x48xf32>
    %c9 = arith.constant 9 : index
    %c0_31 = arith.constant 0 : index
    %272 = vector.load %arg0[%c9, %c0_31] : memref<85x48xf32, #tpu.memory_space<vmem>>, vector<1x48xf32>
    %c10 = arith.constant 10 : index
    %c0_32 = arith.constant 0 : index
    %273 = vector.load %arg0[%c10, %c0_32] : memref<85x48xf32, #tpu.memory_space<vmem>>, vector<1x48xf32>
    %c11 = arith.constant 11 : index
    %c0_33 = arith.constant 0 : index
    %274 = vector.load %arg0[%c11, %c0_33] : memref<85x48xf32, #tpu.memory_space<vmem>>, vector<1x48xf32>
    %275 = vector.broadcast %272 : vector<1x48xf32> to vector<8x48xf32>
    %276 = arith.mulf %68, %275 : vector<8x48xf32>
    %277 = vector.broadcast %273 : vector<1x48xf32> to vector<8x48xf32>
    %278 = arith.addf %276, %277 : vector<8x48xf32>
    %279 = vector.broadcast %272 : vector<1x48xf32> to vector<8x48xf32>
    %280 = arith.mulf %78, %279 : vector<8x48xf32>
    %281 = vector.broadcast %274 : vector<1x48xf32> to vector<8x48xf32>
    %282 = arith.addf %280, %281 : vector<8x48xf32>
    %283 = vector.broadcast %272 : vector<1x48xf32> to vector<8x48xf32>
    %284 = arith.mulf %257, %283 : vector<8x48xf32>
    %285 = vector.broadcast %273 : vector<1x48xf32> to vector<8x48xf32>
    %286 = arith.addf %284, %285 : vector<8x48xf32>
    %287 = vector.broadcast %272 : vector<1x48xf32> to vector<8x48xf32>
    %288 = arith.mulf %264, %287 : vector<8x48xf32>
    %289 = vector.broadcast %274 : vector<1x48xf32> to vector<8x48xf32>
    %290 = arith.addf %288, %289 : vector<8x48xf32>
    %c54 = arith.constant 54 : index
    %c0_34 = arith.constant 0 : index
    %291 = vector.load %arg0[%c54, %c0_34] : memref<85x48xf32, #tpu.memory_space<vmem>>, vector<1x48xf32>
    %c55 = arith.constant 55 : index
    %c0_35 = arith.constant 0 : index
    %292 = vector.load %arg0[%c55, %c0_35] : memref<85x48xf32, #tpu.memory_space<vmem>>, vector<1x48xf32>
    %c56 = arith.constant 56 : index
    %c0_36 = arith.constant 0 : index
    %293 = vector.load %arg0[%c56, %c0_36] : memref<85x48xf32, #tpu.memory_space<vmem>>, vector<1x48xf32>
    %294 = arith.mulf %291, %291 : vector<1x48xf32>
    %295 = arith.mulf %292, %292 : vector<1x48xf32>
    %296 = arith.addf %294, %295 : vector<1x48xf32>
    %297 = arith.mulf %293, %293 : vector<1x48xf32>
    %298 = arith.addf %296, %297 : vector<1x48xf32>
    %cst_37 = arith.constant 9.99999996E-13 : f32
    %299 = vector.broadcast %cst_37 : f32 to vector<1x48xf32>
    %300 = arith.addf %298, %299 : vector<1x48xf32>
    %301 = math.sqrt %300 : vector<1x48xf32>
    %cst_38 = arith.constant 1.000000e+00 : f32
    %302 = vector.broadcast %cst_38 : f32 to vector<1x48xf32>
    %303 = arith.divf %302, %301 : vector<1x48xf32>
    %304 = arith.mulf %291, %303 : vector<1x48xf32>
    %305 = arith.mulf %292, %303 : vector<1x48xf32>
    %306 = arith.mulf %293, %303 : vector<1x48xf32>
    %307 = math.cos %301 : vector<1x48xf32>
    %308 = math.sin %301 : vector<1x48xf32>
    %cst_39 = arith.constant 1.000000e+00 : f32
    %309 = vector.broadcast %cst_39 : f32 to vector<1x48xf32>
    %310 = arith.subf %309, %307 : vector<1x48xf32>
    %311 = arith.mulf %310, %304 : vector<1x48xf32>
    %312 = arith.mulf %311, %304 : vector<1x48xf32>
    %313 = arith.addf %307, %312 : vector<1x48xf32>
    %314 = arith.mulf %310, %304 : vector<1x48xf32>
    %315 = arith.mulf %314, %305 : vector<1x48xf32>
    %316 = arith.mulf %308, %306 : vector<1x48xf32>
    %317 = arith.subf %315, %316 : vector<1x48xf32>
    %318 = arith.mulf %310, %304 : vector<1x48xf32>
    %319 = arith.mulf %318, %306 : vector<1x48xf32>
    %320 = arith.mulf %308, %305 : vector<1x48xf32>
    %321 = arith.addf %319, %320 : vector<1x48xf32>
    %322 = arith.mulf %310, %305 : vector<1x48xf32>
    %323 = arith.mulf %322, %304 : vector<1x48xf32>
    %324 = arith.mulf %308, %306 : vector<1x48xf32>
    %325 = arith.addf %323, %324 : vector<1x48xf32>
    %326 = arith.mulf %310, %305 : vector<1x48xf32>
    %327 = arith.mulf %326, %305 : vector<1x48xf32>
    %328 = arith.addf %307, %327 : vector<1x48xf32>
    %329 = arith.mulf %310, %305 : vector<1x48xf32>
    %330 = arith.mulf %329, %306 : vector<1x48xf32>
    %331 = arith.mulf %308, %304 : vector<1x48xf32>
    %332 = arith.subf %330, %331 : vector<1x48xf32>
    %333 = arith.mulf %310, %306 : vector<1x48xf32>
    %334 = arith.mulf %333, %304 : vector<1x48xf32>
    %335 = arith.mulf %308, %305 : vector<1x48xf32>
    %336 = arith.subf %334, %335 : vector<1x48xf32>
    %337 = arith.mulf %310, %306 : vector<1x48xf32>
    %338 = arith.mulf %337, %305 : vector<1x48xf32>
    %339 = arith.mulf %308, %304 : vector<1x48xf32>
    %340 = arith.addf %338, %339 : vector<1x48xf32>
    %341 = arith.mulf %310, %306 : vector<1x48xf32>
    %342 = arith.mulf %341, %306 : vector<1x48xf32>
    %343 = arith.addf %307, %342 : vector<1x48xf32>
    %c57 = arith.constant 57 : index
    %c0_40 = arith.constant 0 : index
    %344 = vector.load %arg0[%c57, %c0_40] : memref<85x48xf32, #tpu.memory_space<vmem>>, vector<1x48xf32>
    %c58 = arith.constant 58 : index
    %c0_41 = arith.constant 0 : index
    %345 = vector.load %arg0[%c58, %c0_41] : memref<85x48xf32, #tpu.memory_space<vmem>>, vector<1x48xf32>
    %c59 = arith.constant 59 : index
    %c0_42 = arith.constant 0 : index
    %346 = vector.load %arg0[%c59, %c0_42] : memref<85x48xf32, #tpu.memory_space<vmem>>, vector<1x48xf32>
    %347 = vector.broadcast %313 : vector<1x48xf32> to vector<8x48xf32>
    %348 = arith.mulf %56, %347 : vector<8x48xf32>
    %349 = vector.broadcast %317 : vector<1x48xf32> to vector<8x48xf32>
    %350 = arith.mulf %57, %349 : vector<8x48xf32>
    %351 = arith.addf %348, %350 : vector<8x48xf32>
    %352 = vector.broadcast %321 : vector<1x48xf32> to vector<8x48xf32>
    %353 = arith.mulf %58, %352 : vector<8x48xf32>
    %354 = arith.addf %351, %353 : vector<8x48xf32>
    %355 = vector.broadcast %344 : vector<1x48xf32> to vector<8x48xf32>
    %356 = arith.addf %354, %355 : vector<8x48xf32>
    %357 = vector.broadcast %325 : vector<1x48xf32> to vector<8x48xf32>
    %358 = arith.mulf %56, %357 : vector<8x48xf32>
    %359 = vector.broadcast %328 : vector<1x48xf32> to vector<8x48xf32>
    %360 = arith.mulf %57, %359 : vector<8x48xf32>
    %361 = arith.addf %358, %360 : vector<8x48xf32>
    %362 = vector.broadcast %332 : vector<1x48xf32> to vector<8x48xf32>
    %363 = arith.mulf %58, %362 : vector<8x48xf32>
    %364 = arith.addf %361, %363 : vector<8x48xf32>
    %365 = vector.broadcast %345 : vector<1x48xf32> to vector<8x48xf32>
    %366 = arith.addf %364, %365 : vector<8x48xf32>
    %367 = vector.broadcast %336 : vector<1x48xf32> to vector<8x48xf32>
    %368 = arith.mulf %56, %367 : vector<8x48xf32>
    %369 = vector.broadcast %340 : vector<1x48xf32> to vector<8x48xf32>
    %370 = arith.mulf %57, %369 : vector<8x48xf32>
    %371 = arith.addf %368, %370 : vector<8x48xf32>
    %372 = vector.broadcast %343 : vector<1x48xf32> to vector<8x48xf32>
    %373 = arith.mulf %58, %372 : vector<8x48xf32>
    %374 = arith.addf %371, %373 : vector<8x48xf32>
    %375 = vector.broadcast %346 : vector<1x48xf32> to vector<8x48xf32>
    %376 = arith.addf %374, %375 : vector<8x48xf32>
    %c66 = arith.constant 66 : index
    %c0_43 = arith.constant 0 : index
    %377 = vector.load %arg0[%c66, %c0_43] : memref<85x48xf32, #tpu.memory_space<vmem>>, vector<1x48xf32>
    %c67 = arith.constant 67 : index
    %c0_44 = arith.constant 0 : index
    %378 = vector.load %arg0[%c67, %c0_44] : memref<85x48xf32, #tpu.memory_space<vmem>>, vector<1x48xf32>
    %c68 = arith.constant 68 : index
    %c0_45 = arith.constant 0 : index
    %379 = vector.load %arg0[%c68, %c0_45] : memref<85x48xf32, #tpu.memory_space<vmem>>, vector<1x48xf32>
    %380 = vector.broadcast %377 : vector<1x48xf32> to vector<8x48xf32>
    %381 = arith.mulf %356, %380 : vector<8x48xf32>
    %382 = vector.broadcast %378 : vector<1x48xf32> to vector<8x48xf32>
    %383 = arith.addf %381, %382 : vector<8x48xf32>
    %384 = vector.broadcast %377 : vector<1x48xf32> to vector<8x48xf32>
    %385 = arith.mulf %366, %384 : vector<8x48xf32>
    %386 = vector.broadcast %379 : vector<1x48xf32> to vector<8x48xf32>
    %387 = arith.addf %385, %386 : vector<8x48xf32>
    %388 = arith.subf %356, %257 : vector<8x48xf32>
    %389 = math.absf %388 : vector<8x48xf32>
    %390 = arith.subf %366, %264 : vector<8x48xf32>
    %391 = math.absf %390 : vector<8x48xf32>
    %392 = arith.addf %389, %391 : vector<8x48xf32>
    %393 = arith.subf %376, %271 : vector<8x48xf32>
    %394 = math.absf %393 : vector<8x48xf32>
    %395 = arith.addf %392, %394 : vector<8x48xf32>
    %cst_46 = arith.constant dense<0.000000e+00> : vector<48xf32>
    %396 = vector.multi_reduction <add>, %395, %cst_46 [0] : vector<8x48xf32> to vector<48xf32>
    %397 = vector.shape_cast %396 : vector<48xf32> to vector<1x48xf32>
    %cst_47 = arith.constant 41.6666679 : f32
    %398 = vector.broadcast %cst_47 : f32 to vector<1x48xf32>
    %399 = arith.mulf %397, %398 : vector<1x48xf32>
    %400 = arith.mulf %399, %250 : vector<1x48xf32>
    %401 = arith.subf %356, %68 : vector<8x48xf32>
    %402 = math.absf %401 : vector<8x48xf32>
    %403 = arith.subf %366, %78 : vector<8x48xf32>
    %404 = math.absf %403 : vector<8x48xf32>
    %405 = arith.addf %402, %404 : vector<8x48xf32>
    %406 = arith.subf %376, %88 : vector<8x48xf32>
    %407 = math.absf %406 : vector<8x48xf32>
    %408 = arith.addf %405, %407 : vector<8x48xf32>
    %cst_48 = arith.constant dense<0.000000e+00> : vector<48xf32>
    %409 = vector.multi_reduction <add>, %408, %cst_48 [0] : vector<8x48xf32> to vector<48xf32>
    %410 = vector.shape_cast %409 : vector<48xf32> to vector<1x48xf32>
    %cst_49 = arith.constant 41.6666679 : f32
    %411 = vector.broadcast %cst_49 : f32 to vector<1x48xf32>
    %412 = arith.mulf %410, %411 : vector<1x48xf32>
    %413 = arith.mulf %412, %250 : vector<1x48xf32>
    %414 = arith.minimumf %400, %413 : vector<1x48xf32>
    %415 = arith.subf %383, %278 : vector<8x48xf32>
    %416 = math.absf %415 : vector<8x48xf32>
    %417 = arith.subf %387, %282 : vector<8x48xf32>
    %418 = math.absf %417 : vector<8x48xf32>
    %419 = arith.addf %416, %418 : vector<8x48xf32>
    %cst_50 = arith.constant dense<0.000000e+00> : vector<48xf32>
    %420 = vector.multi_reduction <add>, %419, %cst_50 [0] : vector<8x48xf32> to vector<48xf32>
    %421 = vector.shape_cast %420 : vector<48xf32> to vector<1x48xf32>
    %cst_51 = arith.constant 6.250000e-02 : f32
    %422 = vector.broadcast %cst_51 : f32 to vector<1x48xf32>
    %423 = arith.mulf %421, %422 : vector<1x48xf32>
    %424 = arith.subf %383, %286 : vector<8x48xf32>
    %425 = math.absf %424 : vector<8x48xf32>
    %426 = arith.subf %387, %290 : vector<8x48xf32>
    %427 = math.absf %426 : vector<8x48xf32>
    %428 = arith.addf %425, %427 : vector<8x48xf32>
    %cst_52 = arith.constant dense<0.000000e+00> : vector<48xf32>
    %429 = vector.multi_reduction <add>, %428, %cst_52 [0] : vector<8x48xf32> to vector<48xf32>
    %430 = vector.shape_cast %429 : vector<48xf32> to vector<1x48xf32>
    %cst_53 = arith.constant 6.250000e-02 : f32
    %431 = vector.broadcast %cst_53 : f32 to vector<1x48xf32>
    %432 = arith.mulf %430, %431 : vector<1x48xf32>
    %433 = arith.minimumf %423, %432 : vector<1x48xf32>
    %434 = arith.mulf %433, %250 : vector<1x48xf32>
    %c54_54 = arith.constant 54 : index
    %c0_55 = arith.constant 0 : index
    %435 = vector.load %arg0[%c54_54, %c0_55] : memref<85x48xf32, #tpu.memory_space<vmem>>, vector<3x48xf32>
    %c0_56 = arith.constant 0 : index
    %c0_57 = arith.constant 0 : index
    %436 = vector.load %arg0[%c0_56, %c0_57] : memref<85x48xf32, #tpu.memory_space<vmem>>, vector<3x48xf32>
    %437 = arith.subf %435, %436 : vector<3x48xf32>
    %438 = math.absf %437 : vector<3x48xf32>
    %439 = vector.broadcast %250 : vector<1x48xf32> to vector<3x48xf32>
    %440 = arith.mulf %438, %439 : vector<3x48xf32>
    %c3_58 = arith.constant 3 : index
    %c0_59 = arith.constant 0 : index
    %441 = vector.load %arg0[%c3_58, %c0_59] : memref<85x48xf32, #tpu.memory_space<vmem>>, vector<3x48xf32>
    %c57_60 = arith.constant 57 : index
    %c0_61 = arith.constant 0 : index
    %442 = vector.load %arg0[%c57_60, %c0_61] : memref<85x48xf32, #tpu.memory_space<vmem>>, vector<3x48xf32>
    %c60 = arith.constant 60 : index
    %c0_62 = arith.constant 0 : index
    %443 = vector.load %arg0[%c60, %c0_62] : memref<85x48xf32, #tpu.memory_space<vmem>>, vector<3x48xf32>
    %444 = arith.subf %442, %441 : vector<3x48xf32>
    %445 = math.absf %444 : vector<3x48xf32>
    %c6 = arith.constant 6 : index
    %c0_63 = arith.constant 0 : index
    %446 = vector.load %arg0[%c6, %c0_63] : memref<85x48xf32, #tpu.memory_space<vmem>>, vector<3x48xf32>
    %447 = arith.subf %441, %446 : vector<3x48xf32>
    %448 = arith.subf %443, %447 : vector<3x48xf32>
    %449 = math.absf %448 : vector<3x48xf32>
    %450 = arith.addf %445, %449 : vector<3x48xf32>
    %c63 = arith.constant 63 : index
    %c0_64 = arith.constant 0 : index
    %451 = vector.load %arg0[%c63, %c0_64] : memref<85x48xf32, #tpu.memory_space<vmem>>, vector<3x48xf32>
    %452 = arith.addf %451, %443 : vector<3x48xf32>
    %453 = arith.subf %452, %442 : vector<3x48xf32>
    %454 = math.absf %453 : vector<3x48xf32>
    %455 = arith.addf %450, %454 : vector<3x48xf32>
    %456 = vector.broadcast %250 : vector<1x48xf32> to vector<3x48xf32>
    %457 = arith.mulf %455, %456 : vector<3x48xf32>
    %c69 = arith.constant 69 : index
    %c0_65 = arith.constant 0 : index
    %458 = vector.load %arg0[%c69, %c0_65] : memref<85x48xf32, #tpu.memory_space<vmem>>, vector<16x48xf32>
    %c12 = arith.constant 12 : index
    %c0_66 = arith.constant 0 : index
    %459 = vector.load %arg0[%c12, %c0_66] : memref<85x48xf32, #tpu.memory_space<vmem>>, vector<16x48xf32>
    %460 = arith.subf %458, %459 : vector<16x48xf32>
    %461 = math.absf %460 : vector<16x48xf32>
    %462 = vector.broadcast %250 : vector<1x48xf32> to vector<16x48xf32>
    %463 = arith.mulf %461, %462 : vector<16x48xf32>
    %464 = tpu.concatenate %440, %457, %463, %414, %434 in 0 : vector<3x48xf32>, vector<3x48xf32>, vector<16x48xf32>, vector<1x48xf32>, vector<1x48xf32> -> vector<24x48xf32>
    %c0_67 = arith.constant 0 : index
    %c0_68 = arith.constant 0 : index
    %465 = vector.load %arg1[%c0_67, %c0_68] : memref<24x48xf32, #tpu.memory_space<vmem>>, vector<24x48xf32>
    tpu.vector_store %arg1[%c0_67, %c0_68], %464 {strides = array<i32>} : memref<24x48xf32, #tpu.memory_space<vmem>>, vector<24x48xf32>,
    return
  }
}

</mosaic_0001>

<llo_original>
// kernel: squeeze.2
$region0: #{squeeze.2}
  %s0 = inlined_call_operand.vmem [shape: f32[48], index: 0, kind: input, shape index: {}]
  %s1 = inlined_call_operand.hbm [shape: f32[6,8], index: 1, kind: output, shape index: {}]
  $region1: #{squeeze.2} parent=0
    #allocation0 [shape = 'u8[4096]{0}', space=vmem, size = 0x1000, scoped, tag = 'operand span for operand 1']
    #allocation1 [shape = 's32[1]{0}', space=sflag, size = 0x4, scoped, tag = 'scoped memory for squeeze.2']
    #allocation2 [shape = 'u8[4096]{0}', space=vmem, size = 0x1000, scoped, tag = 'scoped mem for input reshape']
    %2 = vsyncpa [#allocation1], 0
    %s4 = ssub.s32 2, 1
    %v5 = vld [vmem:[%s0] sm:%s4]
    %6 = vst [vmem:[#allocation2] sm:%s4] %v5
    %v7 = vld [vmem:[#allocation2] sm:$0x1]
    %vm8 = vcmask 64512
    %9 = vst.msk [vmem:[#allocation0] sm:$0x1] %vm8, %v7
    %v10 = vld [vmem:[#allocation2] sm:$0x1]
    %11 = vrot.lane.b32.xlu0 %v10, 120
    %v12 = vpop.permute.xlu0 %11
    %vm13 = vcmask 64512
    %s14 = scalar_lea.vmem [#allocation0], 1
    %15 = vst.msk [vmem:[%s14] sm:$0x1] %vm13, %v12
    %v16 = vld [vmem:[#allocation2] sm:$0x1]
    %17 = vrot.lane.b32.xlu0 %v16, 112
    %v18 = vpop.permute.xlu0 %17
    %vm19 = vcmask 64512
    %s20 = scalar_lea.vmem [#allocation0], 2
    %21 = vst.msk [vmem:[%s20] sm:$0x1] %vm19, %v18
    %v22 = vld [vmem:[#allocation2] sm:$0x1]
    %23 = vrot.lane.b32.xlu0 %v22, 104
    %v24 = vpop.permute.xlu0 %23
    %vm25 = vcmask 64512
    %s26 = scalar_lea.vmem [#allocation0], 3
    %27 = vst.msk [vmem:[%s26] sm:$0x1] %vm25, %v24
    %v28 = vld [vmem:[#allocation2] sm:$0x1]
    %29 = vrot.lane.b32.xlu0 %v28, 96
    %v30 = vpop.permute.xlu0 %29
    %vm31 = vcmask 64512
    %s32 = scalar_lea.vmem [#allocation0], 4
    %33 = vst.msk [vmem:[%s32] sm:$0x1] %vm31, %v30
    %v34 = vld [vmem:[#allocation2] sm:$0x1]
    %35 = vrot.lane.b32.xlu0 %v34, 88
    %v36 = vpop.permute.xlu0 %35
    %vm37 = vcmask 64512
    %s38 = scalar_lea.vmem [#allocation0], 5
    %39 = vst.msk [vmem:[%s38] sm:$0x1] %vm37, %v36
    %41 = vsyncadd [#allocation1], 0
    %s43 = sshll.u32 [#allocation0], 4
    %s44 = int_to_ptr.vmem [resolvable:$true] %s43
    %s45 = sshll.u32 %s1, 4
    %s46 = int_to_ptr.hbm [resolvable:$true] %s45
    %48 = dma.vmem_to_hbm [thread:$0]  %s44, 128, %s46, [#allocation1]
    %50 = dma.done [#allocation1], 128
    %51 = vsyncpa [#allocation1], 1

// kernel: obj_pose_loss_pallas.1
$region0: #{obj_pose_loss_pallas.1}
  #allocation0 [shape = 'u32[]', space=smem, size = 0x4, offset = 0x4, fixed_abs, tag = 'smem constant byte address 0x4 - core index']
  #allocation1 [shape = 'u32[72,128]{1,0:T(1,128)}', space=vmem, size = 0x9000, scoped, tag = 'internal scratch']
  %s0 = inlined_call_operand.vmem [shape: f32[85,48], index: 0, kind: input, shape index: {}]
  %s1 = inlined_call_operand.vmem [shape: f32[24,48], index: 1, kind: output, shape index: {}]
  %s2 = sld [smem:[#allocation0]]
  $region14: #{obj_pose_loss_pallas.1} parent=0
    _
  %s4 = ssub.s32 1, %s2
  %s5 = scalar_select 0, %s4, %s2
  // Predicated region
  $region2: #{obj_pose_loss_pallas.1} parent=0 // pred_check
    _
  $region3: #{obj_pose_loss_pallas.1} parent=0 // pred_check_branch
    %7 = sbr.rel (0) target = $region5
  $region4: #{obj_pose_loss_pallas.1} parent=0 // pred_region
    _
  $region5: #{obj_pose_loss_pallas.1} parent=0 // pred_fallthru
    _
  %v8 = vld [vmem:[%s0] sm:$0x1]
  %v9 = vld [vmem:[%s0 + $0x1] sm:$0x1]
  %v10 = vld [vmem:[%s0 + $0x2] sm:$0x1]
  %v11 = vmul.f32 %v8, %v8
  %v12 = vmul.f32 %v9, %v9
  %v13 = vadd.f32 %v11, %v12
  %v14 = vmul.f32 %v10, %v10
  %v15 = vadd.f32 %v13, %v14
  %v16 = vadd.f32 %v15, 1e-12
  %v17 = vrsqrt.pop %v16
  %v18 = vmul.f32 %v17, %v16
  %v19 = vmul.f32 %v18, %v17
  %v20 = vmul.f32 0.5, %v19
  %v21 = vsub.f32 1.5, %v20
  %v22 = vmul.f32 %v17, %v21
  %v23 = vmul.f32 %v16, %v22
  %vm24 = vcmp.eq.f32.partialorder %v16, inf
  %v25 = vsel %vm24, %v16, %v23
  %vm26 = vcmp.eq.f32.partialorder %v16, 0.0
  %v27 = vand.u32 %v16, 2147483648
  %v28 = vsel %vm26, %v27, %v25
  %v29 = vrcp.pop %v28
  %v30 = vmul.f32 %v28, %v29
  %v31 = vsub.f32 1.0, %v30
  %v32 = vmul.f32 %v29, %v31
  %v33 = vadd.f32 %v29, %v32
  %vm34 = vweird.f32 %v28
  %vm35 = vweird.f32 %v29
  %vm36 = vmor %vm34, %vm35
  %v37 = vsel %vm36, %v29, %v33
  %v38 = vand.u32 2147483647, %v28
  %vm39 = vcmp.eq.f32.partialorder %v38, 8.507059e+37
  %v40 = vand.u32 %v28, 2147483648
  %v41 = vor.u32 1.1754944e-38, %v40
  %v42 = vsel %vm39, %v41, %v37
  %v43 = vmul.f32 1.0, %v42
  %v44 = vmul.f32 %v8, %v43
  %v45 = vmul.f32 %v9, %v43
  %v46 = vmul.f32 %v10, %v43
  %v47 = vand.u32 2147483647, %v28
  %vm48 = vcmp.le.f32.partialorder %v47, 0.7853982
  %vm49 = vcmp.lt.s32.totalorder %v28, 0
  %v50 = vand.u32 %v28, 2139095040
  %v51 = vshrl.u32 %v50, 23
  %v52 = vsub.s32 %v51, 127
  %v53 = vand.u32 2147483647, %v28
  %v54 = vand.u32 %v53, 8388607
  %v55 = vor.u32 %v54, 8388608
  %v56 = vsub.s32 0, %v55
  %v57 = vadd.s32 %v52, 1
  %vm58 = vcmp.gt.s32.totalorder %v57, 0
  %v59 = vsel %vm58, %v57, 0
  %v60 = vshrl.u32 %v59, 5
  %v61 = vand.u32 %v59, 31
  %v62 = vsub.s32 32, %v61
  %v63 = vshrl.u32 683565275, %v62
  %v64 = vshll.u32 683565275, %v61
  %v65 = vshrl.u32 2475754826, %v62
  %v66 = vor.u32 %v64, %v65
  %v67 = vshll.u32 2475754826, %v61
  %v68 = vshrl.u32 2131351028, %v62
  %v69 = vor.u32 %v67, %v68
  %v70 = vshll.u32 2131351028, %v61
  %v71 = vshrl.u32 2102212464, %v62
  %v72 = vor.u32 %v70, %v71
  %v73 = vshll.u32 2102212464, %v61
  %v74 = vshrl.u32 920167782, %v62
  %v75 = vor.u32 %v73, %v74
  %v76 = vshll.u32 920167782, %v61
  %v77 = vshrl.u32 1326507024, %v62
  %v78 = vor.u32 %v76, %v77
  %vm79 = vcmp.lt.s32.totalorder %v60, 1
  %vm80 = vcmp.lt.s32.totalorder %v60, 2
  %vm81 = vcmp.lt.s32.totalorder %v60, 3
  %vm82 = vcmp.lt.s32.totalorder %v60, 4
  %v83 = vsel %vm79, %v63, %v66
  %v84 = vsel %vm82, %v72, 2102212464
  %v85 = vsel %vm81, %v69, %v84
  %v86 = vsel %vm80, %v83, %v85
  %v87 = vsel %vm79, %v66, %v69
  %v88 = vsel %vm82, %v75, 920167782
  %v89 = vsel %vm81, %v72, %v88
  %v90 = vsel %vm80, %v87, %v89
  %v91 = vsel %vm79, %v69, %v72
  %v92 = vsel %vm82, %v78, 1326507024
  %v93 = vsel %vm81, %v75, %v92
  %v94 = vsel %vm80, %v91, %v93
  %v95 = vshll.u32 %v55, 8
  %v96 = vand.u32 %v95, 65535
  %v97 = vshrl.u32 %v95, 16
  %v98 = vand.u32 %v94, 65535
  %v99 = vshrl.u32 %v94, 16
  %v100 = vmul.u32 %v96, %v98
  %v101 = vmul.u32 %v96, %v99
  %v102 = vmul.u32 %v97, %v98
  %v103 = vmul.u32 %v97, %v99
  %v104 = vshll.u32 %v101, 16
  %v105 = vshrl.u32 %v101, 16
  %v106 = vshll.u32 %v102, 16
  %v107 = vshrl.u32 %v102, 16
  %vm108 = vc.u32 %v100, %v104
  %v109 = vsel %vm108, 1, 0
  %v110 = vadd.s32 %v100, %v104
  %v111 = vadd.s32 %v103, %v109
  %vm112 = vc.u32 %v110, %v106
  %v113 = vsel %vm112, 1, 0
  %v114 = vadd.s32 %v110, %v106
  %v115 = vadd.s32 %v111, %v113
  %v116 = vadd.s32 %v115, %v105
  %v117 = vadd.s32 %v116, %v107
  %v118 = vand.u32 %v95, 65535
  %v119 = vshrl.u32 %v95, 16
  %v120 = vand.u32 %v90, 65535
  %v121 = vshrl.u32 %v90, 16
  %v122 = vmul.u32 %v118, %v120
  %v123 = vmul.u32 %v118, %v121
  %v124 = vmul.u32 %v119, %v120
  %v125 = vmul.u32 %v119, %v121
  %v126 = vshll.u32 %v123, 16
  %v127 = vshrl.u32 %v123, 16
  %v128 = vshll.u32 %v124, 16
  %v129 = vshrl.u32 %v124, 16
  %vm130 = vc.u32 %v122, %v126
  %v131 = vsel %vm130, 1, 0
  %v132 = vadd.s32 %v122, %v126
  %v133 = vadd.s32 %v125, %v131
  %vm134 = vc.u32 %v132, %v128
  %v135 = vsel %vm134, 1, 0
  %v136 = vadd.s32 %v132, %v128
  %v137 = vadd.s32 %v133, %v135
  %v138 = vadd.s32 %v137, %v127
  %v139 = vadd.s32 %v138, %v129
  %v140 = vmul.u32 %v95, %v86
  %v141 = vadd.s32 %v117, %v136
  %vm142 = vc.u32 %v117, %v136
  %v143 = vadd.s32 %v139, 1
  %v144 = vsel %vm142, %v143, %v139
  %v145 = vadd.s32 %v140, %v144
  %v146 = vadd.s32 %v145, 536870912
  %v147 = vshrl.u32 %v146, 30
  %v148 = vshll.u32 %v147, 30
  %v149 = vsub.s32 %v145, %v148
  %vm150 = vcmp.lt.s32.totalorder %v149, 0
  %v151 = vsub.s32 0, %v149
  %v152 = vsel %vm150, %v151, %v149
  %v153 = vclz %v152
  %v154 = vsub.s32 %v153, 2
  %vm155 = vcmp.gt.s32.totalorder 0, %v154
  %v156 = vsel %vm155, 0, %v154
  %v157 = vsub.s32 32, %v156
  %v158 = vshll.u32 %v149, %v156
  %v159 = vshrl.u32 %v141, %v157
  %v160 = vor.u32 %v158, %v159
  %v161 = vsub.s32 4294967266, %v156
  %v162 = vadd.s32 %v161, 127
  %v163 = vshll.u32 %v162, 23
  %v164 = vor.u32 4788187, %v163
  %v165 = vand.u32 2147483647, %v164
  %v167 = vcvt.s32.f32 %v160
  %v168 = vmul.f32 %v167, %v165
  %v169 = vxor.u32 %v168, 2147483648
  %v170 = vsel %vm49, %v169, %v168
  %v171 = vsub.s32 4, %v147
  %v172 = vsel %vm49, %v171, %v147
  %v173 = vsel %vm48, %v28, %v170
  %v174 = vsel %vm48, 0, %v172
  %v175 = vmul.f32 %v173, %v173
  %v176 = vmul.f32 %v175, -0.001358992
  %v177 = vadd.f32 %v176, 0.041655596
  %v178 = vmul.f32 %v175, %v177
  %v179 = vadd.f32 %v178, -0.4999988
  %v180 = vmul.f32 %v175, %v179
  %v181 = vadd.f32 1.0, %v180
  %v182 = vmul.f32 %v173, %v173
  %v183 = vmul.f32 %v182, -0.00019511016
  %v184 = vadd.f32 %v183, 0.008332121
  %v185 = vmul.f32 %v182, %v184
  %v186 = vadd.f32 %v185, -0.16666654
  %v187 = vmul.f32 %v182, %v186
  %v188 = vadd.f32 %v187, 1.0
  %v189 = vmul.f32 %v188, %v173
  %vm190 = vweird.f32 %v28
  %v191 = vand.u32 %v174, 3
  %vm192 = vcmp.lt.s32.totalorder %v191, 2
  %vm193 = vcmp.eq.s32.totalorder %v191, 0
  %v194 = vxor.u32 %v189, 2147483648
  %v195 = vsel %vm193, %v181, %v194
  %vm196 = vcmp.eq.s32.totalorder %v191, 2
  %v197 = vxor.u32 %v181, 2147483648
  %v198 = vsel %vm196, %v197, %v189
  %v199 = vsel %vm192, %v195, %v198
  %v200 = vsel %vm190, nan, %v199
  %v201 = vand.u32 2147483647, %v28
  %vm202 = vcmp.le.f32.partialorder %v201, 0.7853982
  %vm203 = vcmp.lt.s32.totalorder %v28, 0
  %v204 = vand.u32 %v28, 2139095040
  %v205 = vshrl.u32 %v204, 23
  %v206 = vsub.s32 %v205, 127
  %v207 = vand.u32 2147483647, %v28
  %v208 = vand.u32 %v207, 8388607
  %v209 = vor.u32 %v208, 8388608
  %v210 = vsub.s32 0, %v209
  %v211 = vadd.s32 %v206, 1
  %vm212 = vcmp.gt.s32.totalorder %v211, 0
  %v213 = vsel %vm212, %v211, 0
  %v214 = vshrl.u32 %v213, 5
  %v215 = vand.u32 %v213, 31
  %v216 = vsub.s32 32, %v215
  %v217 = vshrl.u32 683565275, %v216
  %v218 = vshll.u32 683565275, %v215
  %v219 = vshrl.u32 2475754826, %v216
  %v220 = vor.u32 %v218, %v219
  %v221 = vshll.u32 2475754826, %v215
  %v222 = vshrl.u32 2131351028, %v216
  %v223 = vor.u32 %v221, %v222
  %v224 = vshll.u32 2131351028, %v215
  %v225 = vshrl.u32 2102212464, %v216
  %v226 = vor.u32 %v224, %v225
  %v227 = vshll.u32 2102212464, %v215
  %v228 = vshrl.u32 920167782, %v216
  %v229 = vor.u32 %v227, %v228
  %v230 = vshll.u32 920167782, %v215
  %v231 = vshrl.u32 1326507024, %v216
  %v232 = vor.u32 %v230, %v231
  %vm233 = vcmp.lt.s32.totalorder %v214, 1
  %vm234 = vcmp.lt.s32.totalorder %v214, 2
  %vm235 = vcmp.lt.s32.totalorder %v214, 3
  %vm236 = vcmp.lt.s32.totalorder %v214, 4
  %v237 = vsel %vm233, %v217, %v220
  %v238 = vsel %vm236, %v226, 2102212464
  %v239 = vsel %vm235, %v223, %v238
  %v240 = vsel %vm234, %v237, %v239
  %v241 = vsel %vm233, %v220, %v223
  %v242 = vsel %vm236, %v229, 920167782
  %v243 = vsel %vm235, %v226, %v242
  %v244 = vsel %vm234, %v241, %v243
  %v245 = vsel %vm233, %v223, %v226
  %v246 = vsel %vm236, %v232, 1326507024
  %v247 = vsel %vm235, %v229, %v246
  %v248 = vsel %vm234, %v245, %v247
  %v249 = vshll.u32 %v209, 8
  %v250 = vand.u32 %v249, 65535
  %v251 = vshrl.u32 %v249, 16
  %v252 = vand.u32 %v248, 65535
  %v253 = vshrl.u32 %v248, 16
  %v254 = vmul.u32 %v250, %v252
  %v255 = vmul.u32 %v250, %v253
  %v256 = vmul.u32 %v251, %v252
  %v257 = vmul.u32 %v251, %v253
  %v258 = vshll.u32 %v255, 16
  %v259 = vshrl.u32 %v255, 16
  %v260 = vshll.u32 %v256, 16
  %v261 = vshrl.u32 %v256, 16
  %vm262 = vc.u32 %v254, %v258
  %v263 = vsel %vm262, 1, 0
  %v264 = vadd.s32 %v254, %v258
  %v265 = vadd.s32 %v257, %v263
  %vm266 = vc.u32 %v264, %v260
  %v267 = vsel %vm266, 1, 0
  %v268 = vadd.s32 %v264, %v260
  %v269 = vadd.s32 %v265, %v267
  %v270 = vadd.s32 %v269, %v259
  %v271 = vadd.s32 %v270, %v261
  %v272 = vand.u32 %v249, 65535
  %v273 = vshrl.u32 %v249, 16
  %v274 = vand.u32 %v244, 65535
  %v275 = vshrl.u32 %v244, 16
  %v276 = vmul.u32 %v272, %v274
  %v277 = vmul.u32 %v272, %v275
  %v278 = vmul.u32 %v273, %v274
  %v279 = vmul.u32 %v273, %v275
  %v280 = vshll.u32 %v277, 16
  %v281 = vshrl.u32 %v277, 16
  %v282 = vshll.u32 %v278, 16
  %v283 = vshrl.u32 %v278, 16
  %vm284 = vc.u32 %v276, %v280
  %v285 = vsel %vm284, 1, 0
  %v286 = vadd.s32 %v276, %v280
  %v287 = vadd.s32 %v279, %v285
  %vm288 = vc.u32 %v286, %v282
  %v289 = vsel %vm288, 1, 0
  %v290 = vadd.s32 %v286, %v282
  %v291 = vadd.s32 %v287, %v289
  %v292 = vadd.s32 %v291, %v281
  %v293 = vadd.s32 %v292, %v283
  %v294 = vmul.u32 %v249, %v240
  %v295 = vadd.s32 %v271, %v290
  %vm296 = vc.u32 %v271, %v290
  %v297 = vadd.s32 %v293, 1
  %v298 = vsel %vm296, %v297, %v293
  %v299 = vadd.s32 %v294, %v298
  %v300 = vadd.s32 %v299, 536870912
  %v301 = vshrl.u32 %v300, 30
  %v302 = vshll.u32 %v301, 30
  %v303 = vsub.s32 %v299, %v302
  %vm304 = vcmp.lt.s32.totalorder %v303, 0
  %v305 = vsub.s32 0, %v303
  %v306 = vsel %vm304, %v305, %v303
  %v307 = vclz %v306
  %v308 = vsub.s32 %v307, 2
  %vm309 = vcmp.gt.s32.totalorder 0, %v308
  %v310 = vsel %vm309, 0, %v308
  %v311 = vsub.s32 32, %v310
  %v312 = vshll.u32 %v303, %v310
  %v313 = vshrl.u32 %v295, %v311
  %v314 = vor.u32 %v312, %v313
  %v315 = vsub.s32 4294967266, %v310
  %v316 = vadd.s32 %v315, 127
  %v317 = vshll.u32 %v316, 23
  %v318 = vor.u32 4788187, %v317
  %v319 = vand.u32 2147483647, %v318
  %v321 = vcvt.s32.f32 %v314
  %v322 = vmul.f32 %v321, %v319
  %v323 = vxor.u32 %v322, 2147483648
  %v324 = vsel %vm203, %v323, %v322
  %v325 = vsub.s32 4, %v301
  %v326 = vsel %vm203, %v325, %v301
  %v327 = vsel %vm202, %v28, %v324
  %v328 = vsel %vm202, 0, %v326
  %v329 = vmul.f32 %v327, %v327
  %v330 = vmul.f32 %v329, -0.001358992
  %v331 = vadd.f32 %v330, 0.041655596
  %v332 = vmul.f32 %v329, %v331
  %v333 = vadd.f32 %v332, -0.4999988
  %v334 = vmul.f32 %v329, %v333
  %v335 = vadd.f32 1.0, %v334
  %v336 = vmul.f32 %v327, %v327
  %v337 = vmul.f32 %v336, -0.00019511016
  %v338 = vadd.f32 %v337, 0.008332121
  %v339 = vmul.f32 %v336, %v338
  %v340 = vadd.f32 %v339, -0.16666654
  %v341 = vmul.f32 %v336, %v340
  %v342 = vadd.f32 %v341, 1.0
  %v343 = vmul.f32 %v342, %v327
  %vm344 = vweird.f32 %v28
  %v345 = vadd.s32 %v328, 3
  %v346 = vand.u32 %v345, 3
  %vm347 = vcmp.lt.s32.totalorder %v346, 2
  %vm348 = vcmp.eq.s32.totalorder %v346, 0
  %v349 = vxor.u32 %v343, 2147483648
  %v350 = vsel %vm348, %v335, %v349
  %vm351 = vcmp.eq.s32.totalorder %v346, 2
  %v352 = vxor.u32 %v335, 2147483648
  %v353 = vsel %vm351, %v352, %v343
  %v354 = vsel %vm347, %v350, %v353
  %v355 = vsel %vm344, nan, %v354
  %v356 = vsub.f32 1.0, %v200
  %v357 = vmul.f32 %v356, %v44
  %v358 = vmul.f32 %v357, %v44
  %v359 = vadd.f32 %v200, %v358
  %v360 = vmul.f32 %v357, %v45
  %v361 = vmul.f32 %v355, %v46
  %v362 = vsub.f32 %v360, %v361
  %v363 = vmul.f32 %v357, %v46
  %v364 = vmul.f32 %v355, %v45
  %v365 = vadd.f32 %v363, %v364
  %v366 = vmul.f32 %v356, %v45
  %v367 = vmul.f32 %v366, %v44
  %v368 = vadd.f32 %v367, %v361
  %v369 = vmul.f32 %v366, %v45
  %v370 = vadd.f32 %v200, %v369
  %v371 = vmul.f32 %v366, %v46
  %v372 = vmul.f32 %v355, %v44
  %v373 = vsub.f32 %v371, %v372
  %v374 = vmul.f32 %v356, %v46
  %v375 = vmul.f32 %v374, %v44
  %v376 = vsub.f32 %v375, %v364
  %v377 = vmul.f32 %v374, %v45
  %v378 = vadd.f32 %v377, %v372
  %v379 = vmul.f32 %v374, %v46
  %v380 = vadd.f32 %v200, %v379
  %v381 = vld [vmem:[%s0 + $0x3] sm:$0x1]
  %v382 = vld [vmem:[%s0 + $0x4] sm:$0x1]
  %v383 = vld [vmem:[%s0 + $0x5] sm:$0x1]
  %v384 = vld [vmem:[%s0 + $0x1e] sm:$0xff]
  %v385 = vld [vmem:[%s0 + $0x26] sm:$0xff]
  %v386 = vld [vmem:[%s0 + $0x2e] sm:$0xff]
  %v387 = vperm.slane %v359, 0
  %v388 = vmul.f32 %v384, %v387
  %v389 = vperm.slane %v362, 0
  %v390 = vmul.f32 %v385, %v389
  %v391 = vadd.f32 %v388, %v390
  %v392 = vperm.slane %v365, 0
  %v393 = vmul.f32 %v386, %v392
  %v394 = vadd.f32 %v391, %v393
  %v395 = vperm.slane %v381, 0
  %v396 = vadd.f32 %v394, %v395
  %v397 = vperm.slane %v368, 0
  %v398 = vmul.f32 %v384, %v397
  %v399 = vperm.slane %v370, 0
  %v400 = vmul.f32 %v385, %v399
  %v401 = vadd.f32 %v398, %v400
  %v402 = vperm.slane %v373, 0
  %v403 = vmul.f32 %v386, %v402
  %v404 = vadd.f32 %v401, %v403
  %v405 = vperm.slane %v382, 0
  %v406 = vadd.f32 %v404, %v405
  %v407 = vperm.slane %v376, 0
  %v408 = vmul.f32 %v384, %v407
  %v409 = vperm.slane %v378, 0
  %v410 = vmul.f32 %v385, %v409
  %v411 = vadd.f32 %v408, %v410
  %v412 = vperm.slane %v380, 0
  %v413 = vmul.f32 %v386, %v412
  %v414 = vadd.f32 %v411, %v413
  %v415 = vperm.slane %v383, 0
  %v416 = vadd.f32 %v414, %v415
  %v417 = vmul.f32 %v365, 3.1415927
  %v418 = vmul.f32 %v373, 3.1415927
  %v419 = vmul.f32 %v380, 3.1415927
  %v420 = vmul.f32 %v417, %v417
  %v421 = vmul.f32 %v418, %v418
  %v422 = vadd.f32 %v420, %v421
  %v423 = vmul.f32 %v419, %v419
  %v424 = vadd.f32 %v422, %v423
  %v425 = vadd.f32 %v424, 1e-12
  %v426 = vrsqrt.pop %v425
  %v427 = vmul.f32 %v426, %v425
  %v428 = vmul.f32 %v427, %v426
  %v429 = vmul.f32 0.5, %v428
  %v430 = vsub.f32 1.5, %v429
  %v431 = vmul.f32 %v426, %v430
  %v432 = vmul.f32 %v425, %v431
  %vm433 = vcmp.eq.f32.partialorder %v425, inf
  %v434 = vsel %vm433, %v425, %v432
  %vm435 = vcmp.eq.f32.partialorder %v425, 0.0
  %v436 = vand.u32 %v425, 2147483648
  %v437 = vsel %vm435, %v436, %v434
  %v438 = vrcp.pop %v437
  %v439 = vmul.f32 %v437, %v438
  %v440 = vsub.f32 1.0, %v439
  %v441 = vmul.f32 %v438, %v440
  %v442 = vadd.f32 %v438, %v441
  %vm443 = vweird.f32 %v437
  %vm444 = vweird.f32 %v438
  %vm445 = vmor %vm443, %vm444
  %v446 = vsel %vm445, %v438, %v442
  %v447 = vand.u32 2147483647, %v437
  %vm448 = vcmp.eq.f32.partialorder %v447, 8.507059e+37
  %v449 = vand.u32 %v437, 2147483648
  %v450 = vor.u32 1.1754944e-38, %v449
  %v451 = vsel %vm448, %v450, %v446
  %v452 = vmul.f32 1.0, %v451
  %v453 = vmul.f32 %v417, %v452
  %v454 = vmul.f32 %v418, %v452
  %v455 = vmul.f32 %v419, %v452
  %v456 = vand.u32 2147483647, %v437
  %vm457 = vcmp.le.f32.partialorder %v456, 0.7853982
  %vm458 = vcmp.lt.s32.totalorder %v437, 0
  %v459 = vand.u32 %v437, 2139095040
  %v460 = vshrl.u32 %v459, 23
  %v461 = vsub.s32 %v460, 127
  %v462 = vand.u32 2147483647, %v437
  %v463 = vand.u32 %v462, 8388607
  %v464 = vor.u32 %v463, 8388608
  %v465 = vsub.s32 0, %v464
  %v466 = vadd.s32 %v461, 1
  %vm467 = vcmp.gt.s32.totalorder %v466, 0
  %v468 = vsel %vm467, %v466, 0
  %v469 = vshrl.u32 %v468, 5
  %v470 = vand.u32 %v468, 31
  %v471 = vsub.s32 32, %v470
  %v472 = vshrl.u32 683565275, %v471
  %v473 = vshll.u32 683565275, %v470
  %v474 = vshrl.u32 2475754826, %v471
  %v475 = vor.u32 %v473, %v474
  %v476 = vshll.u32 2475754826, %v470
  %v477 = vshrl.u32 2131351028, %v471
  %v478 = vor.u32 %v476, %v477
  %v479 = vshll.u32 2131351028, %v470
  %v480 = vshrl.u32 2102212464, %v471
  %v481 = vor.u32 %v479, %v480
  %v482 = vshll.u32 2102212464, %v470
  %v483 = vshrl.u32 920167782, %v471
  %v484 = vor.u32 %v482, %v483
  %v485 = vshll.u32 920167782, %v470
  %v486 = vshrl.u32 1326507024, %v471
  %v487 = vor.u32 %v485, %v486
  %vm488 = vcmp.lt.s32.totalorder %v469, 1
  %vm489 = vcmp.lt.s32.totalorder %v469, 2
  %vm490 = vcmp.lt.s32.totalorder %v469, 3
  %vm491 = vcmp.lt.s32.totalorder %v469, 4
  %v492 = vsel %vm488, %v472, %v475
  %v493 = vsel %vm491, %v481, 2102212464
  %v494 = vsel %vm490, %v478, %v493
  %v495 = vsel %vm489, %v492, %v494
  %v496 = vsel %vm488, %v475, %v478
  %v497 = vsel %vm491, %v484, 920167782
  %v498 = vsel %vm490, %v481, %v497
  %v499 = vsel %vm489, %v496, %v498
  %v500 = vsel %vm488, %v478, %v481
  %v501 = vsel %vm491, %v487, 1326507024
  %v502 = vsel %vm490, %v484, %v501
  %v503 = vsel %vm489, %v500, %v502
  %v504 = vshll.u32 %v464, 8
  %v505 = vand.u32 %v504, 65535
  %v506 = vshrl.u32 %v504, 16
  %v507 = vand.u32 %v503, 65535
  %v508 = vshrl.u32 %v503, 16
  %v509 = vmul.u32 %v505, %v507
  %v510 = vmul.u32 %v505, %v508
  %v511 = vmul.u32 %v506, %v507
  %v512 = vmul.u32 %v506, %v508
  %v513 = vshll.u32 %v510, 16
  %v514 = vshrl.u32 %v510, 16
  %v515 = vshll.u32 %v511, 16
  %v516 = vshrl.u32 %v511, 16
  %vm517 = vc.u32 %v509, %v513
  %v518 = vsel %vm517, 1, 0
  %v519 = vadd.s32 %v509, %v513
  %v520 = vadd.s32 %v512, %v518
  %vm521 = vc.u32 %v519, %v515
  %v522 = vsel %vm521, 1, 0
  %v523 = vadd.s32 %v519, %v515
  %v524 = vadd.s32 %v520, %v522
  %v525 = vadd.s32 %v524, %v514
  %v526 = vadd.s32 %v525, %v516
  %v527 = vand.u32 %v504, 65535
  %v528 = vshrl.u32 %v504, 16
  %v529 = vand.u32 %v499, 65535
  %v530 = vshrl.u32 %v499, 16
  %v531 = vmul.u32 %v527, %v529
  %v532 = vmul.u32 %v527, %v530
  %v533 = vmul.u32 %v528, %v529
  %v534 = vmul.u32 %v528, %v530
  %v535 = vshll.u32 %v532, 16
  %v536 = vshrl.u32 %v532, 16
  %v537 = vshll.u32 %v533, 16
  %v538 = vshrl.u32 %v533, 16
  %vm539 = vc.u32 %v531, %v535
  %v540 = vsel %vm539, 1, 0
  %v541 = vadd.s32 %v531, %v535
  %v542 = vadd.s32 %v534, %v540
  %vm543 = vc.u32 %v541, %v537
  %v544 = vsel %vm543, 1, 0
  %v545 = vadd.s32 %v541, %v537
  %v546 = vadd.s32 %v542, %v544
  %v547 = vadd.s32 %v546, %v536
  %v548 = vadd.s32 %v547, %v538
  %v549 = vmul.u32 %v504, %v495
  %v550 = vadd.s32 %v526, %v545
  %vm551 = vc.u32 %v526, %v545
  %v552 = vadd.s32 %v548, 1
  %v553 = vsel %vm551, %v552, %v548
  %v554 = vadd.s32 %v549, %v553
  %v555 = vadd.s32 %v554, 536870912
  %v556 = vshrl.u32 %v555, 30
  %v557 = vshll.u32 %v556, 30
  %v558 = vsub.s32 %v554, %v557
  %vm559 = vcmp.lt.s32.totalorder %v558, 0
  %v560 = vsub.s32 0, %v558
  %v561 = vsel %vm559, %v560, %v558
  %v562 = vclz %v561
  %v563 = vsub.s32 %v562, 2
  %vm564 = vcmp.gt.s32.totalorder 0, %v563
  %v565 = vsel %vm564, 0, %v563
  %v566 = vsub.s32 32, %v565
  %v567 = vshll.u32 %v558, %v565
  %v568 = vshrl.u32 %v550, %v566
  %v569 = vor.u32 %v567, %v568
  %v570 = vsub.s32 4294967266, %v565
  %v571 = vadd.s32 %v570, 127
  %v572 = vshll.u32 %v571, 23
  %v573 = vor.u32 4788187, %v572
  %v574 = vand.u32 2147483647, %v573
  %v576 = vcvt.s32.f32 %v569
  %v577 = vmul.f32 %v576, %v574
  %v578 = vxor.u32 %v577, 2147483648
  %v579 = vsel %vm458, %v578, %v577
  %v580 = vsub.s32 4, %v556
  %v581 = vsel %vm458, %v580, %v556
  %v582 = vsel %vm457, %v437, %v579
  %v583 = vsel %vm457, 0, %v581
  %v584 = vmul.f32 %v582, %v582
  %v585 = vmul.f32 %v584, -0.001358992
  %v586 = vadd.f32 %v585, 0.041655596
  %v587 = vmul.f32 %v584, %v586
  %v588 = vadd.f32 %v587, -0.4999988
  %v589 = vmul.f32 %v584, %v588
  %v590 = vadd.f32 1.0, %v589
  %v591 = vmul.f32 %v582, %v582
  %v592 = vmul.f32 %v591, -0.00019511016
  %v593 = vadd.f32 %v592, 0.008332121
  %v594 = vmul.f32 %v591, %v593
  %v595 = vadd.f32 %v594, -0.16666654
  %v596 = vmul.f32 %v591, %v595
  %v597 = vadd.f32 %v596, 1.0
  %v598 = vmul.f32 %v597, %v582
  %vm599 = vweird.f32 %v437
  %v600 = vand.u32 %v583, 3
  %vm601 = vcmp.lt.s32.totalorder %v600, 2
  %vm602 = vcmp.eq.s32.totalorder %v600, 0
  %v603 = vxor.u32 %v598, 2147483648
  %v604 = vsel %vm602, %v590, %v603
  %vm605 = vcmp.eq.s32.totalorder %v600, 2
  %v606 = vxor.u32 %v590, 2147483648
  %v607 = vsel %vm605, %v606, %v598
  %v608 = vsel %vm601, %v604, %v607
  %v609 = vsel %vm599, nan, %v608
  %v610 = vand.u32 2147483647, %v437
  %vm611 = vcmp.le.f32.partialorder %v610, 0.7853982
  %vm612 = vcmp.lt.s32.totalorder %v437, 0
  %v613 = vand.u32 %v437, 2139095040
  %v614 = vshrl.u32 %v613, 23
  %v615 = vsub.s32 %v614, 127
  %v616 = vand.u32 2147483647, %v437
  %v617 = vand.u32 %v616, 8388607
  %v618 = vor.u32 %v617, 8388608
  %v619 = vsub.s32 0, %v618
  %v620 = vadd.s32 %v615, 1
  %vm621 = vcmp.gt.s32.totalorder %v620, 0
  %v622 = vsel %vm621, %v620, 0
  %v623 = vshrl.u32 %v622, 5
  %v624 = vand.u32 %v622, 31
  %v625 = vsub.s32 32, %v624
  %v626 = vshrl.u32 683565275, %v625
  %v627 = vshll.u32 683565275, %v624
  %v628 = vshrl.u32 2475754826, %v625
  %v629 = vor.u32 %v627, %v628
  %v630 = vshll.u32 2475754826, %v624
  %v631 = vshrl.u32 2131351028, %v625
  %v632 = vor.u32 %v630, %v631
  %v633 = vshll.u32 2131351028, %v624
  %v634 = vshrl.u32 2102212464, %v625
  %v635 = vor.u32 %v633, %v634
  %v636 = vshll.u32 2102212464, %v624
  %v637 = vshrl.u32 920167782, %v625
  %v638 = vor.u32 %v636, %v637
  %v639 = vshll.u32 920167782, %v624
  %v640 = vshrl.u32 1326507024, %v625
  %v641 = vor.u32 %v639, %v640
  %vm642 = vcmp.lt.s32.totalorder %v623, 1
  %vm643 = vcmp.lt.s32.totalorder %v623, 2
  %vm644 = vcmp.lt.s32.totalorder %v623, 3
  %vm645 = vcmp.lt.s32.totalorder %v623, 4
  %v646 = vsel %vm642, %v626, %v629
  %v647 = vsel %vm645, %v635, 2102212464
  %v648 = vsel %vm644, %v632, %v647
  %v649 = vsel %vm643, %v646, %v648
  %v650 = vsel %vm642, %v629, %v632
  %v651 = vsel %vm645, %v638, 920167782
  %v652 = vsel %vm644, %v635, %v651
  %v653 = vsel %vm643, %v650, %v652
  %v654 = vsel %vm642, %v632, %v635
  %v655 = vsel %vm645, %v641, 1326507024
  %v656 = vsel %vm644, %v638, %v655
  %v657 = vsel %vm643, %v654, %v656
  %v658 = vshll.u32 %v618, 8
  %v659 = vand.u32 %v658, 65535
  %v660 = vshrl.u32 %v658, 16
  %v661 = vand.u32 %v657, 65535
  %v662 = vshrl.u32 %v657, 16
  %v663 = vmul.u32 %v659, %v661
  %v664 = vmul.u32 %v659, %v662
  %v665 = vmul.u32 %v660, %v661
  %v666 = vmul.u32 %v660, %v662
  %v667 = vshll.u32 %v664, 16
  %v668 = vshrl.u32 %v664, 16
  %v669 = vshll.u32 %v665, 16
  %v670 = vshrl.u32 %v665, 16
  %vm671 = vc.u32 %v663, %v667
  %v672 = vsel %vm671, 1, 0
  %v673 = vadd.s32 %v663, %v667
  %v674 = vadd.s32 %v666, %v672
  %vm675 = vc.u32 %v673, %v669
  %v676 = vsel %vm675, 1, 0
  %v677 = vadd.s32 %v673, %v669
  %v678 = vadd.s32 %v674, %v676
  %v679 = vadd.s32 %v678, %v668
  %v680 = vadd.s32 %v679, %v670
  %v681 = vand.u32 %v658, 65535
  %v682 = vshrl.u32 %v658, 16
  %v683 = vand.u32 %v653, 65535
  %v684 = vshrl.u32 %v653, 16
  %v685 = vmul.u32 %v681, %v683
  %v686 = vmul.u32 %v681, %v684
  %v687 = vmul.u32 %v682, %v683
  %v688 = vmul.u32 %v682, %v684
  %v689 = vshll.u32 %v686, 16
  %v690 = vshrl.u32 %v686, 16
  %v691 = vshll.u32 %v687, 16
  %v692 = vshrl.u32 %v687, 16
  %vm693 = vc.u32 %v685, %v689
  %v694 = vsel %vm693, 1, 0
  %v695 = vadd.s32 %v685, %v689
  %v696 = vadd.s32 %v688, %v694
  %vm697 = vc.u32 %v695, %v691
  %v698 = vsel %vm697, 1, 0
  %v699 = vadd.s32 %v695, %v691
  %v700 = vadd.s32 %v696, %v698
  %v701 = vadd.s32 %v700, %v690
  %v702 = vadd.s32 %v701, %v692
  %v703 = vmul.u32 %v658, %v649
  %v704 = vadd.s32 %v680, %v699
  %vm705 = vc.u32 %v680, %v699
  %v706 = vadd.s32 %v702, 1
  %v707 = vsel %vm705, %v706, %v702
  %v708 = vadd.s32 %v703, %v707
  %v709 = vadd.s32 %v708, 536870912
  %v710 = vshrl.u32 %v709, 30
  %v711 = vshll.u32 %v710, 30
  %v712 = vsub.s32 %v708, %v711
  %vm713 = vcmp.lt.s32.totalorder %v712, 0
  %v714 = vsub.s32 0, %v712
  %v715 = vsel %vm713, %v714, %v712
  %v716 = vclz %v715
  %v717 = vsub.s32 %v716, 2
  %vm718 = vcmp.gt.s32.totalorder 0, %v717
  %v719 = vsel %vm718, 0, %v717
  %v720 = vsub.s32 32, %v719
  %v721 = vshll.u32 %v712, %v719
  %v722 = vshrl.u32 %v704, %v720
  %v723 = vor.u32 %v721, %v722
  %v724 = vsub.s32 4294967266, %v719
  %v725 = vadd.s32 %v724, 127
  %v726 = vshll.u32 %v725, 23
  %v727 = vor.u32 4788187, %v726
  %v728 = vand.u32 2147483647, %v727
  %v730 = vcvt.s32.f32 %v723
  %v731 = vmul.f32 %v730, %v728
  %v732 = vxor.u32 %v731, 2147483648
  %v733 = vsel %vm612, %v732, %v731
  %v734 = vsub.s32 4, %v710
  %v735 = vsel %vm612, %v734, %v710
  %v736 = vsel %vm611, %v437, %v733
  %v737 = vsel %vm611, 0, %v735
  %v738 = vmul.f32 %v736, %v736
  %v739 = vmul.f32 %v738, -0.001358992
  %v740 = vadd.f32 %v739, 0.041655596
  %v741 = vmul.f32 %v738, %v740
  %v742 = vadd.f32 %v741, -0.4999988
  %v743 = vmul.f32 %v738, %v742
  %v744 = vadd.f32 1.0, %v743
  %v745 = vmul.f32 %v736, %v736
  %v746 = vmul.f32 %v745, -0.00019511016
  %v747 = vadd.f32 %v746, 0.008332121
  %v748 = vmul.f32 %v745, %v747
  %v749 = vadd.f32 %v748, -0.16666654
  %v750 = vmul.f32 %v745, %v749
  %v751 = vadd.f32 %v750, 1.0
  %v752 = vmul.f32 %v751, %v736
  %vm753 = vweird.f32 %v437
  %v754 = vadd.s32 %v737, 3
  %v755 = vand.u32 %v754, 3
  %vm756 = vcmp.lt.s32.totalorder %v755, 2
  %vm757 = vcmp.eq.s32.totalorder %v755, 0
  %v758 = vxor.u32 %v752, 2147483648
  %v759 = vsel %vm757, %v744, %v758
  %vm760 = vcmp.eq.s32.totalorder %v755, 2
  %v761 = vxor.u32 %v744, 2147483648
  %v762 = vsel %vm760, %v761, %v752
  %v763 = vsel %vm756, %v759, %v762
  %v764 = vsel %vm753, nan, %v763
  %v765 = vsub.f32 1.0, %v609
  %v766 = vmul.f32 %v765, %v453
  %v767 = vmul.f32 %v766, %v453
  %v768 = vadd.f32 %v609, %v767
  %v769 = vmul.f32 %v766, %v454
  %v770 = vmul.f32 %v764, %v455
  %v771 = vsub.f32 %v769, %v770
  %v772 = vmul.f32 %v766, %v455
  %v773 = vmul.f32 %v764, %v454
  %v774 = vadd.f32 %v772, %v773
  %v775 = vmul.f32 %v765, %v454
  %v776 = vmul.f32 %v775, %v453
  %v777 = vadd.f32 %v776, %v770
  %v778 = vmul.f32 %v775, %v454
  %v779 = vadd.f32 %v609, %v778
  %v780 = vmul.f32 %v775, %v455
  %v781 = vmul.f32 %v764, %v453
  %v782 = vsub.f32 %v780, %v781
  %v783 = vmul.f32 %v765, %v455
  %v784 = vmul.f32 %v783, %v453
  %v785 = vsub.f32 %v784, %v773
  %v786 = vmul.f32 %v783, %v454
  %v787 = vadd.f32 %v786, %v781
  %v788 = vmul.f32 %v783, %v455
  %v789 = vadd.f32 %v609, %v788
  %v790 = vmul.f32 %v768, %v359
  %v791 = vmul.f32 %v771, %v368
  %v792 = vadd.f32 %v790, %v791
  %v793 = vmul.f32 %v774, %v376
  %v794 = vadd.f32 %v792, %v793
  %v795 = vmul.f32 %v768, %v362
  %v796 = vmul.f32 %v771, %v370
  %v797 = vadd.f32 %v795, %v796
  %v798 = vmul.f32 %v774, %v378
  %v799 = vadd.f32 %v797, %v798
  %v800 = vmul.f32 %v768, %v365
  %v801 = vmul.f32 %v771, %v373
  %v802 = vadd.f32 %v800, %v801
  %v803 = vmul.f32 %v774, %v380
  %v804 = vadd.f32 %v802, %v803
  %v805 = vmul.f32 %v777, %v359
  %v806 = vmul.f32 %v779, %v368
  %v807 = vadd.f32 %v805, %v806
  %v808 = vmul.f32 %v782, %v376
  %v809 = vadd.f32 %v807, %v808
  %v810 = vmul.f32 %v777, %v362
  %v811 = vmul.f32 %v779, %v370
  %v812 = vadd.f32 %v810, %v811
  %v813 = vmul.f32 %v782, %v378
  %v814 = vadd.f32 %v812, %v813
  %v815 = vmul.f32 %v777, %v365
  %v816 = vmul.f32 %v779, %v373
  %v817 = vadd.f32 %v815, %v816
  %v818 = vmul.f32 %v782, %v380
  %v819 = vadd.f32 %v817, %v818
  %v820 = vmul.f32 %v785, %v359
  %v821 = vmul.f32 %v787, %v368
  %v822 = vadd.f32 %v820, %v821
  %v823 = vmul.f32 %v789, %v376
  %v824 = vadd.f32 %v822, %v823
  %v825 = vmul.f32 %v785, %v362
  %v826 = vmul.f32 %v787, %v370
  %v827 = vadd.f32 %v825, %v826
  %v828 = vmul.f32 %v789, %v378
  %v829 = vadd.f32 %v827, %v828
  %v830 = vmul.f32 %v785, %v365
  %v831 = vmul.f32 %v787, %v373
  %v832 = vadd.f32 %v830, %v831
  %v833 = vmul.f32 %v789, %v380
  %v834 = vadd.f32 %v832, %v833
  %v835 = vperm.slane %v794, 0
  %v836 = vmul.f32 %v384, %v835
  %v837 = vperm.slane %v799, 0
  %v838 = vmul.f32 %v385, %v837
  %v839 = vadd.f32 %v836, %v838
  %v840 = vperm.slane %v804, 0
  %v841 = vmul.f32 %v386, %v840
  %v842 = vadd.f32 %v839, %v841
  %v843 = vadd.f32 %v842, %v395
  %v844 = vperm.slane %v809, 0
  %v845 = vmul.f32 %v384, %v844
  %v846 = vperm.slane %v814, 0
  %v847 = vmul.f32 %v385, %v846
  %v848 = vadd.f32 %v845, %v847
  %v849 = vperm.slane %v819, 0
  %v850 = vmul.f32 %v386, %v849
  %v851 = vadd.f32 %v848, %v850
  %v852 = vadd.f32 %v851, %v405
  %v853 = vperm.slane %v824, 0
  %v854 = vmul.f32 %v384, %v853
  %v855 = vperm.slane %v829, 0
  %v856 = vmul.f32 %v385, %v855
  %v857 = vadd.f32 %v854, %v856
  %v858 = vperm.slane %v834, 0
  %v859 = vmul.f32 %v386, %v858
  %v860 = vadd.f32 %v857, %v859
  %v861 = vadd.f32 %v860, %v415
  %v862 = vld [vmem:[%s0 + $0x1c] sm:$0x1]
  %vm863 = vcmp.eq.f32.partialorder %v862, 6.0
  %vm864 = vcmp.eq.f32.partialorder %v862, 21.0
  %vm865 = vmor %vm863, %vm864
  %vm866 = vcmp.eq.f32.partialorder %v862, 10.0
  %vm867 = vmor %vm865, %vm866
  %vm868 = vcmp.eq.f32.partialorder %v862, 4.0
  %vm869 = vmor %vm867, %vm868
  %vm870 = vcmp.eq.f32.partialorder %v862, 3.0
  %vm871 = vmor %vm869, %vm870
  %v872 = vsel %vm871, 1, 0
  %v873 = vcvt.s32.f32 %v872
  %vm874 = vcmp.eq.f32.partialorder %v862, 24.0
  %vm875 = vmor %vm874, %vm866
  %v876 = vsel %vm875, 1, 0
  %v877 = vcvt.s32.f32 %v876
  %v878 = vld [vmem:[%s0 + $0x1d] sm:$0x1]
  %v879 = vsub.f32 1.0, %v877
  %v880 = vmul.f32 %v878, %v879
  %v881 = vmul.f32 %v877, 4.0
  %v882 = vadd.f32 %v880, %v881
  %v883 = vperm.slane %v873, 0
  %v884 = vmul.f32 %v843, %v883
  %v885 = vsub.f32 1.0, %v873
  %v886 = vperm.slane %v885, 0
  %v887 = vmul.f32 %v396, %v886
  %v888 = vadd.f32 %v884, %v887
  %v889 = vmul.f32 %v852, %v883
  %v890 = vmul.f32 %v406, %v886
  %v891 = vadd.f32 %v889, %v890
  %v892 = vmul.f32 %v861, %v883
  %v893 = vmul.f32 %v416, %v886
  %v894 = vadd.f32 %v892, %v893
  %v895 = vld [vmem:[%s0 + $0x9] sm:$0x1]
  %v896 = vld [vmem:[%s0 + $0xa] sm:$0x1]
  %v897 = vld [vmem:[%s0 + $0xb] sm:$0x1]
  %v898 = vperm.slane %v895, 0
  %v899 = vmul.f32 %v396, %v898
  %v900 = vperm.slane %v896, 0
  %v901 = vadd.f32 %v899, %v900
  %v902 = vmul.f32 %v406, %v898
  %v903 = vperm.slane %v897, 0
  %v904 = vadd.f32 %v902, %v903
  %v905 = vmul.f32 %v888, %v898
  %v906 = vadd.f32 %v905, %v900
  %v907 = vmul.f32 %v891, %v898
  %v908 = vadd.f32 %v907, %v903
  %v909 = vld [vmem:[%s0 + $0x36] sm:$0x1]
  %v910 = vld [vmem:[%s0 + $0x37] sm:$0x1]
  %v911 = vld [vmem:[%s0 + $0x38] sm:$0x1]
  %v912 = vmul.f32 %v909, %v909
  %v913 = vmul.f32 %v910, %v910
  %v914 = vadd.f32 %v912, %v913
  %v915 = vmul.f32 %v911, %v911
  %v916 = vadd.f32 %v914, %v915
  %v917 = vadd.f32 %v916, 1e-12
  %v918 = vrsqrt.pop %v917
  %v919 = vmul.f32 %v918, %v917
  %v920 = vmul.f32 %v919, %v918
  %v921 = vmul.f32 0.5, %v920
  %v922 = vsub.f32 1.5, %v921
  %v923 = vmul.f32 %v918, %v922
  %v924 = vmul.f32 %v917, %v923
  %vm925 = vcmp.eq.f32.partialorder %v917, inf
  %v926 = vsel %vm925, %v917, %v924
  %vm927 = vcmp.eq.f32.partialorder %v917, 0.0
  %v928 = vand.u32 %v917, 2147483648
  %v929 = vsel %vm927, %v928, %v926
  %v930 = vrcp.pop %v929
  %v931 = vmul.f32 %v929, %v930
  %v932 = vsub.f32 1.0, %v931
  %v933 = vmul.f32 %v930, %v932
  %v934 = vadd.f32 %v930, %v933
  %vm935 = vweird.f32 %v929
  %vm936 = vweird.f32 %v930
  %vm937 = vmor %vm935, %vm936
  %v938 = vsel %vm937, %v930, %v934
  %v939 = vand.u32 2147483647, %v929
  %vm940 = vcmp.eq.f32.partialorder %v939, 8.507059e+37
  %v941 = vand.u32 %v929, 2147483648
  %v942 = vor.u32 1.1754944e-38, %v941
  %v943 = vsel %vm940, %v942, %v938
  %v944 = vmul.f32 1.0, %v943
  %v945 = vmul.f32 %v909, %v944
  %v946 = vmul.f32 %v910, %v944
  %v947 = vmul.f32 %v911, %v944
  %v948 = vand.u32 2147483647, %v929
  %vm949 = vcmp.le.f32.partialorder %v948, 0.7853982
  %vm950 = vcmp.lt.s32.totalorder %v929, 0
  %v951 = vand.u32 %v929, 2139095040
  %v952 = vshrl.u32 %v951, 23
  %v953 = vsub.s32 %v952, 127
  %v954 = vand.u32 2147483647, %v929
  %v955 = vand.u32 %v954, 8388607
  %v956 = vor.u32 %v955, 8388608
  %v957 = vsub.s32 0, %v956
  %v958 = vadd.s32 %v953, 1
  %vm959 = vcmp.gt.s32.totalorder %v958, 0
  %v960 = vsel %vm959, %v958, 0
  %v961 = vshrl.u32 %v960, 5
  %v962 = vand.u32 %v960, 31
  %v963 = vsub.s32 32, %v962
  %v964 = vshrl.u32 683565275, %v963
  %v965 = vshll.u32 683565275, %v962
  %v966 = vshrl.u32 2475754826, %v963
  %v967 = vor.u32 %v965, %v966
  %v968 = vshll.u32 2475754826, %v962
  %v969 = vshrl.u32 2131351028, %v963
  %v970 = vor.u32 %v968, %v969
  %v971 = vshll.u32 2131351028, %v962
  %v972 = vshrl.u32 2102212464, %v963
  %v973 = vor.u32 %v971, %v972
  %v974 = vshll.u32 2102212464, %v962
  %v975 = vshrl.u32 920167782, %v963
  %v976 = vor.u32 %v974, %v975
  %v977 = vshll.u32 920167782, %v962
  %v978 = vshrl.u32 1326507024, %v963
  %v979 = vor.u32 %v977, %v978
  %vm980 = vcmp.lt.s32.totalorder %v961, 1
  %vm981 = vcmp.lt.s32.totalorder %v961, 2
  %vm982 = vcmp.lt.s32.totalorder %v961, 3
  %vm983 = vcmp.lt.s32.totalorder %v961, 4
  %v984 = vsel %vm980, %v964, %v967
  %v985 = vsel %vm983, %v973, 2102212464
  %v986 = vsel %vm982, %v970, %v985
  %v987 = vsel %vm981, %v984, %v986
  %v988 = vsel %vm980, %v967, %v970
  %v989 = vsel %vm983, %v976, 920167782
  %v990 = vsel %vm982, %v973, %v989
  %v991 = vsel %vm981, %v988, %v990
  %v992 = vsel %vm980, %v970, %v973
  %v993 = vsel %vm983, %v979, 1326507024
  %v994 = vsel %vm982, %v976, %v993
  %v995 = vsel %vm981, %v992, %v994
  %v996 = vshll.u32 %v956, 8
  %v997 = vand.u32 %v996, 65535
  %v998 = vshrl.u32 %v996, 16
  %v999 = vand.u32 %v995, 65535
  %v1000 = vshrl.u32 %v995, 16
  %v1001 = vmul.u32 %v997, %v999
  %v1002 = vmul.u32 %v997, %v1000
  %v1003 = vmul.u32 %v998, %v999
  %v1004 = vmul.u32 %v998, %v1000
  %v1005 = vshll.u32 %v1002, 16
  %v1006 = vshrl.u32 %v1002, 16
  %v1007 = vshll.u32 %v1003, 16
  %v1008 = vshrl.u32 %v1003, 16
  %vm1009 = vc.u32 %v1001, %v1005
  %v1010 = vsel %vm1009, 1, 0
  %v1011 = vadd.s32 %v1001, %v1005
  %v1012 = vadd.s32 %v1004, %v1010
  %vm1013 = vc.u32 %v1011, %v1007
  %v1014 = vsel %vm1013, 1, 0
  %v1015 = vadd.s32 %v1011, %v1007
  %v1016 = vadd.s32 %v1012, %v1014
  %v1017 = vadd.s32 %v1016, %v1006
  %v1018 = vadd.s32 %v1017, %v1008
  %v1019 = vand.u32 %v996, 65535
  %v1020 = vshrl.u32 %v996, 16
  %v1021 = vand.u32 %v991, 65535
  %v1022 = vshrl.u32 %v991, 16
  %v1023 = vmul.u32 %v1019, %v1021
  %v1024 = vmul.u32 %v1019, %v1022
  %v1025 = vmul.u32 %v1020, %v1021
  %v1026 = vmul.u32 %v1020, %v1022
  %v1027 = vshll.u32 %v1024, 16
  %v1028 = vshrl.u32 %v1024, 16
  %v1029 = vshll.u32 %v1025, 16
  %v1030 = vshrl.u32 %v1025, 16
  %vm1031 = vc.u32 %v1023, %v1027
  %v1032 = vsel %vm1031, 1, 0
  %v1033 = vadd.s32 %v1023, %v1027
  %v1034 = vadd.s32 %v1026, %v1032
  %vm1035 = vc.u32 %v1033, %v1029
  %v1036 = vsel %vm1035, 1, 0
  %v1037 = vadd.s32 %v1033, %v1029
  %v1038 = vadd.s32 %v1034, %v1036
  %v1039 = vadd.s32 %v1038, %v1028
  %v1040 = vadd.s32 %v1039, %v1030
  %v1041 = vmul.u32 %v996, %v987
  %v1042 = vadd.s32 %v1018, %v1037
  %vm1043 = vc.u32 %v1018, %v1037
  %v1044 = vadd.s32 %v1040, 1
  %v1045 = vsel %vm1043, %v1044, %v1040
  %v1046 = vadd.s32 %v1041, %v1045
  %v1047 = vadd.s32 %v1046, 536870912
  %v1048 = vshrl.u32 %v1047, 30
  %v1049 = vshll.u32 %v1048, 30
  %v1050 = vsub.s32 %v1046, %v1049
  %vm1051 = vcmp.lt.s32.totalorder %v1050, 0
  %v1052 = vsub.s32 0, %v1050
  %v1053 = vsel %vm1051, %v1052, %v1050
  %v1054 = vclz %v1053
  %v1055 = vsub.s32 %v1054, 2
  %vm1056 = vcmp.gt.s32.totalorder 0, %v1055
  %v1057 = vsel %vm1056, 0, %v1055
  %v1058 = vsub.s32 32, %v1057
  %v1059 = vshll.u32 %v1050, %v1057
  %v1060 = vshrl.u32 %v1042, %v1058
  %v1061 = vor.u32 %v1059, %v1060
  %v1062 = vsub.s32 4294967266, %v1057
  %v1063 = vadd.s32 %v1062, 127
  %v1064 = vshll.u32 %v1063, 23
  %v1065 = vor.u32 4788187, %v1064
  %v1066 = vand.u32 2147483647, %v1065
  %v1068 = vcvt.s32.f32 %v1061
  %v1069 = vmul.f32 %v1068, %v1066
  %v1070 = vxor.u32 %v1069, 2147483648
  %v1071 = vsel %vm950, %v1070, %v1069
  %v1072 = vsub.s32 4, %v1048
  %v1073 = vsel %vm950, %v1072, %v1048
  %v1074 = vsel %vm949, %v929, %v1071
  %v1075 = vsel %vm949, 0, %v1073
  %v1076 = vmul.f32 %v1074, %v1074
  %v1077 = vmul.f32 %v1076, -0.001358992
  %v1078 = vadd.f32 %v1077, 0.041655596
  %v1079 = vmul.f32 %v1076, %v1078
  %v1080 = vadd.f32 %v1079, -0.4999988
  %v1081 = vmul.f32 %v1076, %v1080
  %v1082 = vadd.f32 1.0, %v1081
  %v1083 = vmul.f32 %v1074, %v1074
  %v1084 = vmul.f32 %v1083, -0.00019511016
  %v1085 = vadd.f32 %v1084, 0.008332121
  %v1086 = vmul.f32 %v1083, %v1085
  %v1087 = vadd.f32 %v1086, -0.16666654
  %v1088 = vmul.f32 %v1083, %v1087
  %v1089 = vadd.f32 %v1088, 1.0
  %v1090 = vmul.f32 %v1089, %v1074
  %vm1091 = vweird.f32 %v929
  %v1092 = vand.u32 %v1075, 3
  %vm1093 = vcmp.lt.s32.totalorder %v1092, 2
  %vm1094 = vcmp.eq.s32.totalorder %v1092, 0
  %v1095 = vxor.u32 %v1090, 2147483648
  %v1096 = vsel %vm1094, %v1082, %v1095
  %vm1097 = vcmp.eq.s32.totalorder %v1092, 2
  %v1098 = vxor.u32 %v1082, 2147483648
  %v1099 = vsel %vm1097, %v1098, %v1090
  %v1100 = vsel %vm1093, %v1096, %v1099
  %v1101 = vsel %vm1091, nan, %v1100
  %v1102 = vand.u32 2147483647, %v929
  %vm1103 = vcmp.le.f32.partialorder %v1102, 0.7853982
  %vm1104 = vcmp.lt.s32.totalorder %v929, 0
  %v1105 = vand.u32 %v929, 2139095040
  %v1106 = vshrl.u32 %v1105, 23
  %v1107 = vsub.s32 %v1106, 127
  %v1108 = vand.u32 2147483647, %v929
  %v1109 = vand.u32 %v1108, 8388607
  %v1110 = vor.u32 %v1109, 8388608
  %v1111 = vsub.s32 0, %v1110
  %v1112 = vadd.s32 %v1107, 1
  %vm1113 = vcmp.gt.s32.totalorder %v1112, 0
  %v1114 = vsel %vm1113, %v1112, 0
  %v1115 = vshrl.u32 %v1114, 5
  %v1116 = vand.u32 %v1114, 31
  %v1117 = vsub.s32 32, %v1116
  %v1118 = vshrl.u32 683565275, %v1117
  %v1119 = vshll.u32 683565275, %v1116
  %v1120 = vshrl.u32 2475754826, %v1117
  %v1121 = vor.u32 %v1119, %v1120
  %v1122 = vshll.u32 2475754826, %v1116
  %v1123 = vshrl.u32 2131351028, %v1117
  %v1124 = vor.u32 %v1122, %v1123
  %v1125 = vshll.u32 2131351028, %v1116
  %v1126 = vshrl.u32 2102212464, %v1117
  %v1127 = vor.u32 %v1125, %v1126
  %v1128 = vshll.u32 2102212464, %v1116
  %v1129 = vshrl.u32 920167782, %v1117
  %v1130 = vor.u32 %v1128, %v1129
  %v1131 = vshll.u32 920167782, %v1116
  %v1132 = vshrl.u32 1326507024, %v1117
  %v1133 = vor.u32 %v1131, %v1132
  %vm1134 = vcmp.lt.s32.totalorder %v1115, 1
  %vm1135 = vcmp.lt.s32.totalorder %v1115, 2
  %vm1136 = vcmp.lt.s32.totalorder %v1115, 3
  %vm1137 = vcmp.lt.s32.totalorder %v1115, 4
  %v1138 = vsel %vm1134, %v1118, %v1121
  %v1139 = vsel %vm1137, %v1127, 2102212464
  %v1140 = vsel %vm1136, %v1124, %v1139
  %v1141 = vsel %vm1135, %v1138, %v1140
  %v1142 = vsel %vm1134, %v1121, %v1124
  %v1143 = vsel %vm1137, %v1130, 920167782
  %v1144 = vsel %vm1136, %v1127, %v1143
  %v1145 = vsel %vm1135, %v1142, %v1144
  %v1146 = vsel %vm1134, %v1124, %v1127
  %v1147 = vsel %vm1137, %v1133, 1326507024
  %v1148 = vsel %vm1136, %v1130, %v1147
  %v1149 = vsel %vm1135, %v1146, %v1148
  %v1150 = vshll.u32 %v1110, 8
  %v1151 = vand.u32 %v1150, 65535
  %v1152 = vshrl.u32 %v1150, 16
  %v1153 = vand.u32 %v1149, 65535
  %v1154 = vshrl.u32 %v1149, 16
  %v1155 = vmul.u32 %v1151, %v1153
  %v1156 = vmul.u32 %v1151, %v1154
  %v1157 = vmul.u32 %v1152, %v1153
  %v1158 = vmul.u32 %v1152, %v1154
  %v1159 = vshll.u32 %v1156, 16
  %v1160 = vshrl.u32 %v1156, 16
  %v1161 = vshll.u32 %v1157, 16
  %v1162 = vshrl.u32 %v1157, 16
  %vm1163 = vc.u32 %v1155, %v1159
  %v1164 = vsel %vm1163, 1, 0
  %v1165 = vadd.s32 %v1155, %v1159
  %v1166 = vadd.s32 %v1158, %v1164
  %vm1167 = vc.u32 %v1165, %v1161
  %v1168 = vsel %vm1167, 1, 0
  %v1169 = vadd.s32 %v1165, %v1161
  %v1170 = vadd.s32 %v1166, %v1168
  %v1171 = vadd.s32 %v1170, %v1160
  %v1172 = vadd.s32 %v1171, %v1162
  %v1173 = vand.u32 %v1150, 65535
  %v1174 = vshrl.u32 %v1150, 16
  %v1175 = vand.u32 %v1145, 65535
  %v1176 = vshrl.u32 %v1145, 16
  %v1177 = vmul.u32 %v1173, %v1175
  %v1178 = vmul.u32 %v1173, %v1176
  %v1179 = vmul.u32 %v1174, %v1175
  %v1180 = vmul.u32 %v1174, %v1176
  %v1181 = vshll.u32 %v1178, 16
  %v1182 = vshrl.u32 %v1178, 16
  %v1183 = vshll.u32 %v1179, 16
  %v1184 = vshrl.u32 %v1179, 16
  %vm1185 = vc.u32 %v1177, %v1181
  %v1186 = vsel %vm1185, 1, 0
  %v1187 = vadd.s32 %v1177, %v1181
  %v1188 = vadd.s32 %v1180, %v1186
  %vm1189 = vc.u32 %v1187, %v1183
  %v1190 = vsel %vm1189, 1, 0
  %v1191 = vadd.s32 %v1187, %v1183
  %v1192 = vadd.s32 %v1188, %v1190
  %v1193 = vadd.s32 %v1192, %v1182
  %v1194 = vadd.s32 %v1193, %v1184
  %v1195 = vmul.u32 %v1150, %v1141
  %v1196 = vadd.s32 %v1172, %v1191
  %vm1197 = vc.u32 %v1172, %v1191
  %v1198 = vadd.s32 %v1194, 1
  %v1199 = vsel %vm1197, %v1198, %v1194
  %v1200 = vadd.s32 %v1195, %v1199
  %v1201 = vadd.s32 %v1200, 536870912
  %v1202 = vshrl.u32 %v1201, 30
  %v1203 = vshll.u32 %v1202, 30
  %v1204 = vsub.s32 %v1200, %v1203
  %vm1205 = vcmp.lt.s32.totalorder %v1204, 0
  %v1206 = vsub.s32 0, %v1204
  %v1207 = vsel %vm1205, %v1206, %v1204
  %v1208 = vclz %v1207
  %v1209 = vsub.s32 %v1208, 2
  %vm1210 = vcmp.gt.s32.totalorder 0, %v1209
  %v1211 = vsel %vm1210, 0, %v1209
  %v1212 = vsub.s32 32, %v1211
  %v1213 = vshll.u32 %v1204, %v1211
  %v1214 = vshrl.u32 %v1196, %v1212
  %v1215 = vor.u32 %v1213, %v1214
  %v1216 = vsub.s32 4294967266, %v1211
  %v1217 = vadd.s32 %v1216, 127
  %v1218 = vshll.u32 %v1217, 23
  %v1219 = vor.u32 4788187, %v1218
  %v1220 = vand.u32 2147483647, %v1219
  %v1222 = vcvt.s32.f32 %v1215
  %v1223 = vmul.f32 %v1222, %v1220
  %v1224 = vxor.u32 %v1223, 2147483648
  %v1225 = vsel %vm1104, %v1224, %v1223
  %v1226 = vsub.s32 4, %v1202
  %v1227 = vsel %vm1104, %v1226, %v1202
  %v1228 = vsel %vm1103, %v929, %v1225
  %v1229 = vsel %vm1103, 0, %v1227
  %v1230 = vmul.f32 %v1228, %v1228
  %v1231 = vmul.f32 %v1230, -0.001358992
  %v1232 = vadd.f32 %v1231, 0.041655596
  %v1233 = vmul.f32 %v1230, %v1232
  %v1234 = vadd.f32 %v1233, -0.4999988
  %v1235 = vmul.f32 %v1230, %v1234
  %v1236 = vadd.f32 1.0, %v1235
  %v1237 = vmul.f32 %v1228, %v1228
  %v1238 = vmul.f32 %v1237, -0.00019511016
  %v1239 = vadd.f32 %v1238, 0.008332121
  %v1240 = vmul.f32 %v1237, %v1239
  %v1241 = vadd.f32 %v1240, -0.16666654
  %v1242 = vmul.f32 %v1237, %v1241
  %v1243 = vadd.f32 %v1242, 1.0
  %v1244 = vmul.f32 %v1243, %v1228
  %vm1245 = vweird.f32 %v929
  %v1246 = vadd.s32 %v1229, 3
  %v1247 = vand.u32 %v1246, 3
  %vm1248 = vcmp.lt.s32.totalorder %v1247, 2
  %vm1249 = vcmp.eq.s32.totalorder %v1247, 0
  %v1250 = vxor.u32 %v1244, 2147483648
  %v1251 = vsel %vm1249, %v1236, %v1250
  %vm1252 = vcmp.eq.s32.totalorder %v1247, 2
  %v1253 = vxor.u32 %v1236, 2147483648
  %v1254 = vsel %vm1252, %v1253, %v1244
  %v1255 = vsel %vm1248, %v1251, %v1254
  %v1256 = vsel %vm1245, nan, %v1255
  %v1257 = vsub.f32 1.0, %v1101
  %v1258 = vmul.f32 %v1257, %v945
  %v1259 = vmul.f32 %v1258, %v945
  %v1260 = vadd.f32 %v1101, %v1259
  %v1261 = vmul.f32 %v1258, %v946
  %v1262 = vmul.f32 %v1256, %v947
  %v1263 = vsub.f32 %v1261, %v1262
  %v1264 = vmul.f32 %v1258, %v947
  %v1265 = vmul.f32 %v1256, %v946
  %v1266 = vadd.f32 %v1264, %v1265
  %v1267 = vmul.f32 %v1257, %v946
  %v1268 = vmul.f32 %v1267, %v945
  %v1269 = vadd.f32 %v1268, %v1262
  %v1270 = vmul.f32 %v1267, %v946
  %v1271 = vadd.f32 %v1101, %v1270
  %v1272 = vmul.f32 %v1267, %v947
  %v1273 = vmul.f32 %v1256, %v945
  %v1274 = vsub.f32 %v1272, %v1273
  %v1275 = vmul.f32 %v1257, %v947
  %v1276 = vmul.f32 %v1275, %v945
  %v1277 = vsub.f32 %v1276, %v1265
  %v1278 = vmul.f32 %v1275, %v946
  %v1279 = vadd.f32 %v1278, %v1273
  %v1280 = vmul.f32 %v1275, %v947
  %v1281 = vadd.f32 %v1101, %v1280
  %v1282 = vld [vmem:[%s0 + $0x39] sm:$0x1]
  %v1283 = vld [vmem:[%s0 + $0x3a] sm:$0x1]
  %v1284 = vld [vmem:[%s0 + $0x3b] sm:$0x1]
  %v1285 = vperm.slane %v1260, 0
  %v1286 = vmul.f32 %v384, %v1285
  %v1287 = vperm.slane %v1263, 0
  %v1288 = vmul.f32 %v385, %v1287
  %v1289 = vadd.f32 %v1286, %v1288
  %v1290 = vperm.slane %v1266, 0
  %v1291 = vmul.f32 %v386, %v1290
  %v1292 = vadd.f32 %v1289, %v1291
  %v1293 = vperm.slane %v1282, 0
  %v1294 = vadd.f32 %v1292, %v1293
  %v1295 = vperm.slane %v1269, 0
  %v1296 = vmul.f32 %v384, %v1295
  %v1297 = vperm.slane %v1271, 0
  %v1298 = vmul.f32 %v385, %v1297
  %v1299 = vadd.f32 %v1296, %v1298
  %v1300 = vperm.slane %v1274, 0
  %v1301 = vmul.f32 %v386, %v1300
  %v1302 = vadd.f32 %v1299, %v1301
  %v1303 = vperm.slane %v1283, 0
  %v1304 = vadd.f32 %v1302, %v1303
  %v1305 = vperm.slane %v1277, 0
  %v1306 = vmul.f32 %v384, %v1305
  %v1307 = vperm.slane %v1279, 0
  %v1308 = vmul.f32 %v385, %v1307
  %v1309 = vadd.f32 %v1306, %v1308
  %v1310 = vperm.slane %v1281, 0
  %v1311 = vmul.f32 %v386, %v1310
  %v1312 = vadd.f32 %v1309, %v1311
  %v1313 = vperm.slane %v1284, 0
  %v1314 = vadd.f32 %v1312, %v1313
  %v1315 = vld [vmem:[%s0 + $0x42] sm:$0x1]
  %v1316 = vld [vmem:[%s0 + $0x43] sm:$0x1]
  %v1317 = vld [vmem:[%s0 + $0x44] sm:$0x1]
  %v1318 = vperm.slane %v1315, 0
  %v1319 = vmul.f32 %v1294, %v1318
  %v1320 = vperm.slane %v1316, 0
  %v1321 = vadd.f32 %v1319, %v1320
  %v1322 = vmul.f32 %v1304, %v1318
  %v1323 = vperm.slane %v1317, 0
  %v1324 = vadd.f32 %v1322, %v1323
  %v1325 = vsub.f32 %v1294, %v888
  %v1326 = vand.u32 2147483647, %v1325
  %v1327 = vsub.f32 %v1304, %v891
  %v1328 = vand.u32 2147483647, %v1327
  %v1329 = vadd.f32 %v1326, %v1328
  %v1330 = vsub.f32 %v1314, %v894
  %v1331 = vand.u32 2147483647, %v1330
  %v1332 = vadd.f32 %v1329, %v1331
  %vm1333 = vcmask 392192
  %v1334 = vsel %vm1333, %v1332, 0.0
  %v1335 = vrot.slane %v1334, 4
  %v1336 = vadd.f32 %v1334, %v1335
  %v1337 = vrot.slane %v1336, 2
  %v1338 = vadd.f32 %v1336, %v1337
  %v1339 = vrot.slane %v1338, 1
  %v1340 = vadd.f32 %v1338, %v1339
  %v1341 = vmul.f32 %v1340, 41.666668
  %v1342 = vmul.f32 %v1341, %v882
  %v1343 = vsub.f32 %v1294, %v396
  %v1344 = vand.u32 2147483647, %v1343
  %v1345 = vsub.f32 %v1304, %v406
  %v1346 = vand.u32 2147483647, %v1345
  %v1347 = vadd.f32 %v1344, %v1346
  %v1348 = vsub.f32 %v1314, %v416
  %v1349 = vand.u32 2147483647, %v1348
  %v1350 = vadd.f32 %v1347, %v1349
  %v1351 = vsel %vm1333, %v1350, 0.0
  %v1352 = vrot.slane %v1351, 4
  %v1353 = vadd.f32 %v1351, %v1352
  %v1354 = vrot.slane %v1353, 2
  %v1355 = vadd.f32 %v1353, %v1354
  %v1356 = vrot.slane %v1355, 1
  %v1357 = vadd.f32 %v1355, %v1356
  %v1358 = vmul.f32 %v1357, 41.666668
  %v1359 = vmul.f32 %v1358, %v882
  %v1360 = vmin.f32 %v1342, %v1359
  %v1361 = vsub.f32 %v1321, %v901
  %v1362 = vand.u32 2147483647, %v1361
  %v1363 = vsub.f32 %v1324, %v904
  %v1364 = vand.u32 2147483647, %v1363
  %v1365 = vadd.f32 %v1362, %v1364
  %v1366 = vsel %vm1333, %v1365, 0.0
  %v1367 = vrot.slane %v1366, 4
  %v1368 = vadd.f32 %v1366, %v1367
  %v1369 = vrot.slane %v1368, 2
  %v1370 = vadd.f32 %v1368, %v1369
  %v1371 = vrot.slane %v1370, 1
  %v1372 = vadd.f32 %v1370, %v1371
  %v1373 = vmul.f32 %v1372, 0.0625
  %v1374 = vsub.f32 %v1321, %v906
  %v1375 = vand.u32 2147483647, %v1374
  %v1376 = vsub.f32 %v1324, %v908
  %v1377 = vand.u32 2147483647, %v1376
  %v1378 = vadd.f32 %v1375, %v1377
  %v1379 = vsel %vm1333, %v1378, 0.0
  %v1380 = vrot.slane %v1379, 4
  %v1381 = vadd.f32 %v1379, %v1380
  %v1382 = vrot.slane %v1381, 2
  %v1383 = vadd.f32 %v1381, %v1382
  %v1384 = vrot.slane %v1383, 1
  %v1385 = vadd.f32 %v1383, %v1384
  %v1386 = vmul.f32 %v1385, 0.0625
  %v1387 = vmin.f32 %v1373, %v1386
  %v1388 = vmul.f32 %v1387, %v882
  %v1389 = vld [vmem:[%s0 + $0x36] sm:$0x7]
  %v1390 = vld [vmem:[%s0] sm:$0x7]
  %v1391 = vsub.f32 %v1389, %v1390
  %v1392 = vand.u32 2147483647, %v1391
  %v1393 = vperm.slane %v882, 0
  %v1394 = vmul.f32 %v1392, %v1393
  %v1395 = vld [vmem:[%s0 + $0x3] sm:$0x7]
  %v1396 = vld [vmem:[%s0 + $0x39] sm:$0x7]
  %v1397 = vld [vmem:[%s0 + $0x3c] sm:$0x7]
  %v1398 = vsub.f32 %v1396, %v1395
  %v1399 = vand.u32 2147483647, %v1398
  %v1400 = vld [vmem:[%s0 + $0x6] sm:$0x7]
  %v1401 = vsub.f32 %v1395, %v1400
  %v1402 = vsub.f32 %v1397, %v1401
  %v1403 = vand.u32 2147483647, %v1402
  %v1404 = vadd.f32 %v1399, %v1403
  %v1405 = vld [vmem:[%s0 + $0x3f] sm:$0x7]
  %v1406 = vadd.f32 %v1405, %v1397
  %v1407 = vsub.f32 %v1406, %v1396
  %v1408 = vand.u32 2147483647, %v1407
  %v1409 = vadd.f32 %v1404, %v1408
  %v1410 = vmul.f32 %v1409, %v1393
  %v1411 = vld [vmem:[%s0 + $0x45] sm:$0xff]
  %v1412 = vld [vmem:[%s0 + $0x4d] sm:$0xff]
  %v1413 = vld [vmem:[%s0 + $0xc] sm:$0xff]
  %v1414 = vld [vmem:[%s0 + $0x14] sm:$0xff]
  %v1415 = vsub.f32 %v1411, %v1413
  %v1416 = vsub.f32 %v1412, %v1414
  %v1417 = vand.u32 2147483647, %v1415
  %v1418 = vand.u32 2147483647, %v1416
  %v1419 = vmul.f32 %v1417, %v1393
  %v1420 = vmul.f32 %v1418, %v1393
  %v1422 = vrot.slane %v1410, 5
  %vm1426 = vcmask 1045504
  %v1427 = vrot.slane %v1419, 2
  %v1428 = vrot.slane %v1420, 2
  %v1429 = vsel %vm1426, %v1427, %v1428
  %v1434 = vrot.slane %v1360, 2
  %v1437 = vrot.slane %v1388, 1
  %vm1439 = vcmask 1042432
  %v1440 = vsel %vm1439, %v1394, %v1422
  %v1441 = vsel %vm1426, %v1440, %v1427
  %v1442 = vsel %vm1426, %v1428, %v1434
  %vm1443 = vcmask 1046528
  %v1444 = vsel %vm1443, %v1442, %v1437
  %1445 = vst.msk [vmem:[%s1] sm:$0xff] %vm1333, %v1441
  %1446 = vst.msk [vmem:[%s1 + $0x8] sm:$0xff] %vm1333, %v1429
  %1447 = vst.msk [vmem:[%s1 + $0x10] sm:$0xff] %vm1333, %v1444
  // Predicated region
  $region6: #{obj_pose_loss_pallas.1} parent=0 // pred_check
    _
  $region7: #{obj_pose_loss_pallas.1} parent=0 // pred_check_branch
    %1449 = sbr.rel (0) target = $region9
  $region8: #{obj_pose_loss_pallas.1} parent=0 // pred_region
    _
  $region9: #{obj_pose_loss_pallas.1} parent=0 // pred_fallthru
    _
  // Predicated region
  $region10: #{obj_pose_loss_pallas.1} parent=0 // pred_check
    _
  $region11: #{obj_pose_loss_pallas.1} parent=0 // pred_check_branch
    %1451 = sbr.rel (0) target = $region13
  $region12: #{obj_pose_loss_pallas.1} parent=0 // pred_region
    _
  $region13: #{obj_pose_loss_pallas.1} parent=0 // pred_fallthru
    _

</llo_original>
